<compile_context>
chip_gen: v7x
topology: tpu7x:2x2x1
jax: 0.10.0
libtpu: 0.0.40
codegen_flags: <defaults>
</compile_context>

<pallas_src>
import jax
import jax.numpy as jnp
from jax.experimental import pallas as pl
from jax.experimental.pallas import tpu as pltpu

# Fixed module hyper-parameters (from the PyTorch __init__).
CIN = 125
COUT = 631
KSIZE = 5
STRIDE = 3
PADDING = 4
OUTPUT_PADDING = 2

CIN_PAD = 128            # Cin padded to one full lane group per tap
N_PAD = 640              # Cout padded to 5*128 -> unmasked lane-dense stores
TAPS_MAX = 4             # max taps per phase (phase tap counts are 1/2/4)
K_PAD = TAPS_MAX * CIN_PAD   # uniform contraction depth = 512


def _round_up(x, m):
    return -(-x // m) * m


def _phase_taps(r):
    """Taps contributing to output positions y with y % STRIDE == r.

    Returns [(d, i)]: input offset d (input index = q + d for y = STRIDE*q + r)
    and flipped-kernel tap index i = STRIDE*d - r.  Assumes edge == 0, i.e.
    PADDING == KSIZE - 1 (true for this module).
    """
    taps = []
    for d in range((KSIZE - 1 + r) // STRIDE + 1):
        i = STRIDE * d - r
        if 0 <= i < KSIZE:
            taps.append((d, i))
    return taps


def _choose_tm(m):
    """M tile: multiple of 16 (bf16 sublanes), capped at 512 rows."""
    n_tiles = max(1, -(-m // 512))
    return _round_up(-(-m // n_tiles), 16)


def _matmul_bias_where_kernel(a_ref, w_ref, bias_ref, o_ref):
    # (TM, 512) x (512, 640) on the MXU, f32 accumulation; epilogue fused.
    acc = jnp.dot(a_ref[...], w_ref[...], preferred_element_type=jnp.float32)
    acc = acc + bias_ref[...]
    # v2 = v1 > 7 ; v3 = v1 * 0.91 ; v4 = where(v2, v1, v3)
    o_ref[...] = jnp.where(acc > 7.0, acc, acc * 0.91)


def _fused_phase_matmul(a_all, w_stacked, bias_row, tm):
    """One pallas_call for all 9 phases.

    a_all:     (9, M_pad, 512) bf16 activations (per-phase im2col slabs)
    w_stacked: (9, 512, 640)   bf16 per-phase weight matrices
    bias_row:  (1, 640)        f32
    Returns (9, M_pad, 640) f32.
    """
    p, m_pad, k = a_all.shape
    assert w_stacked.shape == (p, k, N_PAD)
    return pl.pallas_call(
        _matmul_bias_where_kernel,
        out_shape=jax.ShapeDtypeStruct((p, m_pad, N_PAD), jnp.float32),
        grid_spec=pltpu.PrefetchScalarGridSpec(
            num_scalar_prefetch=0,
            # Phase axis outermost -> weight block index changes only 9 times;
            # within a phase the (512, 640) weight tile stays VMEM-resident.
            grid=(p, m_pad // tm),
            in_specs=[
                pl.BlockSpec((None, tm, k), lambda ph, i: (ph, i, 0)),
                pl.BlockSpec((None, k, N_PAD), lambda ph, i: (ph, 0, 0)),
                pl.BlockSpec((1, N_PAD), lambda ph, i: (0, 0)),
            ],
            out_specs=pl.BlockSpec((None, tm, N_PAD), lambda ph, i: (ph, i, 0)),
        ),
        compiler_params=pltpu.CompilerParams(
            dimension_semantics=("parallel", "parallel")),
    )(a_all, w_stacked, bias_row)


def prepare_params(w_t, bias):
    """Hoisted weight transform (run once, not per forward call).

    w_t: (CIN, COUT, KSIZE, KSIZE) ConvTranspose2d weight; bias: (COUT,).
    Returns stacked per-phase bf16 weights (9, 512, 640) + f32 bias row (1, 640).
    Unused tap slots (phases with < 4 taps) get zero weight rows, so the
    uniform K = 512 contraction stays exact.
    """
    assert KSIZE - 1 - PADDING == 0, "phase decomposition assumes edge == 0"
    mats = []
    for ry in range(STRIDE):
        taps_y = _phase_taps(ry)
        for rx in range(STRIDE):
            taps_x = _phase_taps(rx)
            blocks = []
            for (_, iy) in taps_y:
                for (_, ix) in taps_x:
                    # flipped-kernel tap (iy, ix) -> original weight index.
                    blk = w_t[:, :, KSIZE - 1 - iy, KSIZE - 1 - ix]  # (125, 631)
                    blk = jnp.pad(blk, ((0, CIN_PAD - CIN), (0, N_PAD - COUT)))
                    blocks.append(blk)
            while len(blocks) < TAPS_MAX:
                blocks.append(jnp.zeros((CIN_PAD, N_PAD), w_t.dtype))
            mats.append(jnp.concatenate(blocks, axis=0))            # (512, 640)
    w_stacked = jnp.stack(mats, axis=0).astype(jnp.bfloat16)        # (9, 512, 640)
    bias_row = jnp.pad(bias.astype(jnp.float32).reshape(1, COUT),
                       ((0, 0), (0, N_PAD - COUT)))
    return w_stacked, bias_row


@jax.jit
def conv_transpose_where(x, w_stacked, bias_row):
    """x: (N, CIN, H, W) f32 NCHW -> (N, COUT, H_out, W_out) f32 NCHW."""
    n, cin, h, w = x.shape
    assert cin == CIN and h >= 3 and w >= 3
    h_out = (h - 1) * STRIDE - 2 * PADDING + KSIZE + OUTPUT_PADDING
    w_out = (w - 1) * STRIDE - 2 * PADDING + KSIZE + OUTPUT_PADDING

    qy0 = -(-h_out // STRIDE)   # phase-0 row count (largest phase) = h - 1
    qx0 = -(-w_out // STRIDE)

    # One NCHW -> NHWC transpose of the (small) input; bf16 for the MXU, pad
    # channels to 128 (lane-dense gather) and spatial by STRIDE-1 zeros so all
    # per-tap slices of length qy0/qx0 stay in range (the padded rows/cols only
    # feed output positions >= h_out/w_out, which are sliced away).
    x_nhwc = jnp.transpose(x, (0, 2, 3, 1)).astype(jnp.bfloat16)
    x_nhwc = jnp.pad(x_nhwc, ((0, 0), (0, STRIDE - 1), (0, STRIDE - 1),
                              (0, CIN_PAD - CIN)))

    m = n * qy0 * qx0
    tm = _choose_tm(m)
    m_pad = _round_up(m, tm)

    # Build per-phase activation slabs; every tap is a clean 128-lane block,
    # phases with < 4 taps reuse tap 0 (their weight rows are zero).
    a_phases = []
    for ry in range(STRIDE):
        taps_y = [d for d, _ in _phase_taps(ry)]
        for rx in range(STRIDE):
            taps_x = [d for d, _ in _phase_taps(rx)]
            taps = [(dy, dx) for dy in taps_y for dx in taps_x]
            taps = taps + [taps[0]] * (TAPS_MAX - len(taps))
            blocks = [x_nhwc[:, dy:dy + qy0, dx:dx + qx0, :] for dy, dx in taps]
            a = jnp.concatenate(blocks, axis=-1)           # (n, qy0, qx0, 512)
            a_phases.append(a.reshape(m, K_PAD))
    a_all = jnp.stack(a_phases, axis=0)                    # (9, M, 512)
    if m_pad != m:
        a_all = jnp.pad(a_all, ((0, 0), (0, m_pad - m), (0, 0)))

    out = _fused_phase_matmul(a_all, w_stacked, bias_row, tm)   # (9, M_pad, 640)

    # Reassemble: lane-dense interleave transpose (last dim stays 640), free
    # reshape to interleaved NHWC, lane-dense spatial slice, and only then the
    # unavoidable NHWC -> NCHW transpose with the channel slice at the very end.
    o = out[:, :m, :].reshape(STRIDE, STRIDE, n, qy0, qx0, N_PAD)
    o = o.transpose(2, 3, 0, 4, 1, 5)                      # (n, qy0, 3, qx0, 3, 640)
    o = o.reshape(n, STRIDE * qy0, STRIDE * qx0, N_PAD)    # pure view reshape
    o = o[:, :h_out, :w_out, :]                            # lane-dense slice
    o = jnp.transpose(o, (0, 3, 1, 2))[:, :COUT]           # NCHW, channel slice last
    return o


def _reference(x, w_t, bias):
    """Plain-JAX f32 reference via lax.conv_general_dilated (transposed-conv rewrite)."""
    edge = KSIZE - 1 - PADDING
    w_conv = jnp.flip(w_t, axis=(2, 3)).transpose(1, 0, 2, 3)  # (COUT, CIN, k, k)
    v1 = jax.lax.conv_general_dilated(
        x, w_conv, window_strides=(1, 1),
        padding=((edge, edge + OUTPUT_PADDING), (edge, edge + OUTPUT_PADDING)),
        lhs_dilation=(STRIDE, STRIDE),
        dimension_numbers=("NCHW", "OIHW", "NCHW"),
        preferred_element_type=jnp.float32)
    v1 = v1 + bias.reshape(1, -1, 1, 1)
    return jnp.where(v1 > 7.0, v1, v1 * 0.91)


if __name__ == "__main__":
    key = jax.random.PRNGKey(0)
    k1, k2 = jax.random.split(key, 2)

    # Small shapes consistent with the module (Cin=125 / Cout=631 fixed by __init__).
    N, H, W = 2, 8, 8

    # Mirrors torch.full((..., 125, H, W), -1, dtype=torch.float)
    x = jnp.full((N, CIN, H, W), -1.0, dtype=jnp.float32)

    # Deterministic ConvTranspose2d parameters (PyTorch-style uniform bounds).
    bound = 1.0 / float(CIN * KSIZE * KSIZE) ** 0.5
    w_t = jax.random.uniform(k1, (CIN, COUT, KSIZE, KSIZE), jnp.float32, -bound, bound)
    bias = jax.random.uniform(k2, (COUT,), jnp.float32, -bound, bound)

    w_stacked, bias_row = prepare_params(w_t, bias)   # hoisted, runs once
    out = conv_transpose_where(x, w_stacked, bias_row)
    out = jax.block_until_ready(out)

    ref = _reference(x, w_t, bias)
    assert out.shape == ref.shape, (out.shape, ref.shape)
    max_err = float(jnp.max(jnp.abs(out - ref)))
    assert max_err < 2e-2, max_err   # bf16 inputs/weights, f32 accumulation

    print("KERNEL_OK")
</pallas_src>

<mosaic_0001>
module attributes {stable_mosaic.version = 11 : i64} {
  func.func @_matmul_bias_where_kernel(%arg0: i32, %arg1: i32, %arg2: memref<1x112x512xbf16, #tpu.memory_space<vmem>>, %arg3: memref<1x512x640xbf16, #tpu.memory_space<vmem>>, %arg4: memref<1x640xf32, #tpu.memory_space<vmem>>, %arg5: memref<1x112x640xf32, #tpu.memory_space<vmem>>) attributes {dimension_semantics = [#tpu.dimension_semantics<parallel>, #tpu.dimension_semantics<parallel>], iteration_bounds = array<i64: 9, 1>, scalar_prefetch = 0 : i64, scratch_operands = 0 : i64, tpu.core_type = #tpu.core_type<tc>, window_params = [{transform_indices = @transform_0, window_bounds = array<i64: 1, 112, 512>}, {transform_indices = @transform_1, window_bounds = array<i64: 1, 512, 640>}, {pipeline_mode = #tpu.pipeline_mode<synchronous>, transform_indices = @transform_2, window_bounds = array<i64: 1, 640>}, {transform_indices = @transform_3, window_bounds = array<i64: 1, 112, 640>}]} {
    %c0 = arith.constant 0 : index
    %c0_0 = arith.constant 0 : index
    %c0_1 = arith.constant 0 : index
    %0 = vector.load %arg2[%c0, %c0_0, %c0_1] : memref<1x112x512xbf16, #tpu.memory_space<vmem>>, vector<1x112x512xbf16>
    %1 = vector.shape_cast %0 : vector<1x112x512xbf16> to vector<112x512xbf16>
    %c0_2 = arith.constant 0 : index
    %c0_3 = arith.constant 0 : index
    %c0_4 = arith.constant 0 : index
    %2 = vector.load %arg3[%c0_2, %c0_3, %c0_4] : memref<1x512x640xbf16, #tpu.memory_space<vmem>>, vector<1x512x640xbf16>
    %3 = vector.shape_cast %2 : vector<1x512x640xbf16> to vector<512x640xbf16>
    %cst = arith.constant dense<0.000000e+00> : vector<112x640xf32>
    %4 = tpu.matmul %1, %3, %cst {dimension_numbers = #tpu.dot_dimension_numbers<[1], [0], [0], [1], [0, 0, 1, 1], [], []>} : vector<112x512xbf16>, vector<512x640xbf16>, vector<112x640xf32> -> vector<112x640xf32>
    %c0_5 = arith.constant 0 : index
    %c0_6 = arith.constant 0 : index
    %5 = vector.load %arg4[%c0_5, %c0_6] : memref<1x640xf32, #tpu.memory_space<vmem>>, vector<1x640xf32>
    %6 = vector.broadcast %5 : vector<1x640xf32> to vector<112x640xf32>
    %7 = arith.addf %4, %6 : vector<112x640xf32>
    %cst_7 = arith.constant 7.000000e+00 : f32
    %8 = vector.broadcast %cst_7 : f32 to vector<112x640xf32>
    %9 = arith.cmpf ogt, %7, %8 : vector<112x640xf32>
    %cst_8 = arith.constant 9.100000e-01 : f32
    %10 = vector.broadcast %cst_8 : f32 to vector<112x640xf32>
    %11 = arith.mulf %7, %10 : vector<112x640xf32>
    %12 = arith.select %9, %7, %11 : vector<112x640xi1>, vector<112x640xf32>
    %c0_9 = arith.constant 0 : index
    %c0_10 = arith.constant 0 : index
    %c0_11 = arith.constant 0 : index
    %13 = vector.load %arg5[%c0_9, %c0_10, %c0_11] : memref<1x112x640xf32, #tpu.memory_space<vmem>>, vector<1x112x640xf32>
    %14 = vector.shape_cast %13 : vector<1x112x640xf32> to vector<112x640xf32>
    %15 = vector.shape_cast %12 : vector<112x640xf32> to vector<1x112x640xf32>
    tpu.vector_store %arg5[%c0_9, %c0_10, %c0_11], %15 {strides = array<i32>} : memref<1x112x640xf32, #tpu.memory_space<vmem>>, vector<1x112x640xf32>,
    return
  }
  func.func @transform_0(%arg0: i32, %arg1: i32) -> (i32, i32, i32) {
    %c0_i32 = arith.constant 0 : i32
    %c0_i32_0 = arith.constant 0 : i32
    return %arg0, %arg1, %c0_i32 : i32, i32, i32
  }
  func.func @transform_1(%arg0: i32, %arg1: i32) -> (i32, i32, i32) {
    %c0_i32 = arith.constant 0 : i32
    %c0_i32_0 = arith.constant 0 : i32
    %c0_i32_1 = arith.constant 0 : i32
    return %arg0, %c0_i32, %c0_i32_0 : i32, i32, i32
  }
  func.func @transform_2(%arg0: i32, %arg1: i32) -> (i32, i32) {
    %c0_i32 = arith.constant 0 : i32
    %c0_i32_0 = arith.constant 0 : i32
    %c0_i32_1 = arith.constant 0 : i32
    return %c0_i32, %c0_i32_0 : i32, i32
  }
  func.func @transform_3(%arg0: i32, %arg1: i32) -> (i32, i32, i32) {
    %c0_i32 = arith.constant 0 : i32
    %c0_i32_0 = arith.constant 0 : i32
    return %arg0, %arg1, %c0_i32 : i32, i32, i32
  }
}

</mosaic_0001>

<llo_original>
// kernel: conv_transpose_where.1
$region0: #{conv_transpose_where.1}
  #allocation0 [shape = 'u32[]', space=smem, size = 0x4, offset = 0x4, fixed_abs, tag = 'smem constant byte address 0x4 - core index']
  #allocation1 [shape = 'u32[144,128]{1,0:T(1,128)}', space=vmem, size = 0x12000, scoped, tag = 'internal scratch']
  %s0 = inlined_call_operand.vmem [shape: bf16[9,112,512], index: 0, kind: input, shape index: {}]
  %s1 = inlined_call_operand.vmem [shape: bf16[9,512,640], index: 1, kind: input, shape index: {}]
  %s2 = inlined_call_operand.vmem [shape: f32[1,640], index: 2, kind: input, shape index: {}]
  %s3 = inlined_call_operand.vmem [shape: f32[9,112,640], index: 3, kind: output, shape index: {}]
  %s4 = sld [smem:[#allocation0]]
  $region45: #{conv_transpose_where.1} parent=0
    _
  %s6 = ssub.s32 1, %s4
  %s7 = scalar_select 0, %s6, %s4
  loop: start=0, step=1, limit=11
  $region2: #{conv_transpose_where.1} parent=0 // loop_pre_header
    _
  $region3: #{conv_transpose_where.1} parent=0 // loop_header
    %s9 = sphi 0, %s13
    %p10 = scmp.ge.s32.totalorder %s9, 11
    %s16 = sphi 0, %s28
    %s17 = sphi 0, %s24
    %s18 = sphi 0, %s16
    %s19 = sphi 0, %s17
    %s20 = sphi 0, %s18
    %s21 = sphi 0, %s19
    %s33 = sphi 0, %s35
    %s36 = sphi 0, %s33
    %s37 = sphi 0, %s36
    %s53 = sphi 0, %s37
    %s59 = sphi 0, %s61
    %s62 = sphi 0, %s59
    %s63 = sphi 0, %s62
    %s79 = sphi 0, %s63
    %s83 = sphi 0, %s83
    %s85 = sphi 0, %s83
    %s86 = sphi 0, %s85
    %s100 = sphi 0, %s86
    %s108 = sphi 0, %s110
    %s111 = sphi 0, %s108
    %s112 = sphi 0, %s111
    %s128 = sphi 0, %s112
  $region4: #{conv_transpose_where.1} parent=0 // loop_header_branch
    %12 = sbr.rel (%p10) target = $region8
  $region5: #{conv_transpose_where.1} parent=0 // loop_body
    %s14 = ssub.s32 %s9, 1
    %s15 = ssub.s32 %s9, 2
    %s22 = sadd.s32 1, %s17
    %p23 = scmp.ge.s32.totalorder %s22, 1
    %s24 = scalar_select %p23, 0, %s22
    %s25 = sadd.s32 1, %s16
    %s26 = scalar_select %p23, %s25, %s16
    %p27 = scmp.ge.s32.totalorder %s26, 9
    %s28 = scalar_select %p27, 0, %s26
    %s29 = ssub.s32 %s16, %s28
    %s30 = ssub.s32 %s17, %s24
    %s31 = sor.u32 %s29, %s30
    %p32 = scmp.eq.s32.totalorder %s31, 0
    %s34 = sadd.s32 %s33, 1
    %s35 = scalar_select %p32, %s33, %s34
    %p38 = pneg %p32
    %p39 = scmp.eq.s32.totalorder %s9, 8
    %p40 = por %p38, %p39
    %p41 = scmp.ne.s32.totalorder %s33, %s36
    %p42 = scmp.eq.s32.totalorder %s9, 0
    %p43 = por %p41, %p42
    %p44 = scmp.ne.s32.totalorder %s33, %s36
    %p45 = scmp.eq.s32.totalorder %s14, 8
    %p46 = por %p44, %p45
    %p47 = scmp.ne.s32.totalorder %s36, %s37
    %p48 = scmp.eq.s32.totalorder %s14, 0
    %p49 = por %p47, %p48
    %p50 = scmp.ne.s32.totalorder %s36, %s37
    %p51 = scmp.eq.s32.totalorder %s15, 8
    %p52 = por %p50, %p51
    %p54 = scmp.ne.s32.totalorder %s37, %s53
    %p55 = scmp.eq.s32.totalorder %s15, 0
    %p56 = por %p54, %p55
    %s57 = ssub.s32 %s16, %s28
    %p58 = scmp.eq.s32.totalorder %s57, 0
    %s60 = sadd.s32 %s59, 1
    %s61 = scalar_select %p58, %s59, %s60
    %p64 = pneg %p58
    %p65 = scmp.eq.s32.totalorder %s9, 8
    %p66 = por %p64, %p65
    %p67 = scmp.ne.s32.totalorder %s59, %s62
    %p68 = scmp.eq.s32.totalorder %s9, 0
    %p69 = por %p67, %p68
    %p70 = scmp.ne.s32.totalorder %s59, %s62
    %p71 = scmp.eq.s32.totalorder %s14, 8
    %p72 = por %p70, %p71
    %p73 = scmp.ne.s32.totalorder %s62, %s63
    %p74 = scmp.eq.s32.totalorder %s14, 0
    %p75 = por %p73, %p74
    %p76 = scmp.ne.s32.totalorder %s62, %s63
    %p77 = scmp.eq.s32.totalorder %s15, 8
    %p78 = por %p76, %p77
    %p80 = scmp.ne.s32.totalorder %s63, %s79
    %p81 = scmp.eq.s32.totalorder %s15, 0
    %p82 = por %p80, %p81
    %s84 = sadd.s32 %s83, 1
    %p87 = scmp.eq.s32.totalorder %s9, 8
    %p88 = scmp.ne.s32.totalorder %s83, %s85
    %p89 = scmp.eq.s32.totalorder %s9, 0
    %p90 = por %p88, %p89
    %p91 = scmp.ne.s32.totalorder %s83, %s85
    %p92 = scmp.eq.s32.totalorder %s14, 8
    %p93 = por %p91, %p92
    %p94 = scmp.ne.s32.totalorder %s85, %s86
    %p95 = scmp.eq.s32.totalorder %s14, 0
    %p96 = por %p94, %p95
    %p97 = scmp.ne.s32.totalorder %s85, %s86
    %p98 = scmp.eq.s32.totalorder %s15, 8
    %p99 = por %p97, %p98
    %p101 = scmp.ne.s32.totalorder %s86, %s100
    %p102 = scmp.eq.s32.totalorder %s15, 0
    %p103 = por %p101, %p102
    %s104 = ssub.s32 %s16, %s28
    %s105 = ssub.s32 %s17, %s24
    %s106 = sor.u32 %s104, %s105
    %p107 = scmp.eq.s32.totalorder %s106, 0
    %s109 = sadd.s32 %s108, 1
    %s110 = scalar_select %p107, %s108, %s109
    %p113 = pneg %p107
    %p114 = scmp.eq.s32.totalorder %s9, 8
    %p115 = por %p113, %p114
    %p116 = scmp.ne.s32.totalorder %s108, %s111
    %p117 = scmp.eq.s32.totalorder %s9, 0
    %p118 = por %p116, %p117
    %p119 = scmp.ne.s32.totalorder %s108, %s111
    %p120 = scmp.eq.s32.totalorder %s14, 8
    %p121 = por %p119, %p120
    %p122 = scmp.ne.s32.totalorder %s111, %s112
    %p123 = scmp.eq.s32.totalorder %s14, 0
    %p124 = por %p122, %p123
    %p125 = scmp.ne.s32.totalorder %s111, %s112
    %p126 = scmp.eq.s32.totalorder %s15, 8
    %p127 = por %p125, %p126
    %p129 = scmp.ne.s32.totalorder %s112, %s128
    %p130 = scmp.eq.s32.totalorder %s15, 0
    %p131 = por %p129, %p130
    %p132 = scmp.le.s32.totalorder 1, %s9
    %p133 = scmp.lt.s32.totalorder %s9, 10
    %p134 = pnand %p132, %p133
    %p135 = pneg %p134
    // Predicated region
    $region9: #{conv_transpose_where.1} parent=5 // pred_check
      _
    $region10: #{conv_transpose_where.1} parent=5 // pred_check_branch
      %137 = sbr.rel (%p134) target = $region12
    $region11: #{conv_transpose_where.1} parent=5 // pred_region
      %s138 = ssub.s32 %s9, 1
      // Predicated region
      $region13: #{conv_transpose_where.1} parent=11 // pred_check
        %p139 = pneg %p96
      $region14: #{conv_transpose_where.1} parent=11 // pred_check_branch
        %141 = sbr.rel (%p139) target = $region16
      $region15: #{conv_transpose_where.1} parent=11 // pred_region
        _
      $region16: #{conv_transpose_where.1} parent=11 // pred_fallthru
        _
    $region12: #{conv_transpose_where.1} parent=5 // pred_fallthru
      _
    %p142 = scmp.lt.s32.totalorder %s9, 9
    // Predicated region
    $region17: #{conv_transpose_where.1} parent=5 // pred_check
      %p143 = pneg %p142
    $region18: #{conv_transpose_where.1} parent=5 // pred_check_branch
      %145 = sbr.rel (%p143) target = $region20
    $region19: #{conv_transpose_where.1} parent=5 // pred_region
      // Predicated region
      $region21: #{conv_transpose_where.1} parent=19 // pred_check
        %p146 = pneg %p43
      $region22: #{conv_transpose_where.1} parent=19 // pred_check_branch
        %148 = sbr.rel (%p146) target = $region24
      $region23: #{conv_transpose_where.1} parent=19 // pred_region
        %s149 = smul.u32 14, %s17
        %p150 = scmp.lt.s32.totalorder %s16, 8
        %s151 = scalar_select %p150, %s16, 8
        %p152 = scmp.lt.s32.totalorder %s149, 13
        %s153 = scalar_select %p152, %s149, 13
        %s154 = smul.addr %s153, 4
        %s155 = smul.addr %s151, 56
        %s156 = sadd.s32 %s154, %s155
        %s157 = smul.addr %s156, 4
        %s158 = scalar_lea.vmem %s0, %s157
        %s159 = smul.u32 14, %s17
      $region24: #{conv_transpose_where.1} parent=19 // pred_fallthru
        _
      // Predicated region
      $region25: #{conv_transpose_where.1} parent=19 // pred_check
        %p160 = pneg %p69
      $region26: #{conv_transpose_where.1} parent=19 // pred_check_branch
        %162 = sbr.rel (%p160) target = $region28
      $region27: #{conv_transpose_where.1} parent=19 // pred_region
        %p163 = scmp.lt.s32.totalorder %s16, 8
        %s164 = scalar_select %p163, %s16, 8
        %s165 = smul.addr %s164, 320
        %s166 = smul.addr %s165, 4
        %s167 = scalar_lea.vmem %s1, %s166
      $region28: #{conv_transpose_where.1} parent=19 // pred_fallthru
        _
    $region20: #{conv_transpose_where.1} parent=5 // pred_fallthru
      _
    %p168 = scmp.le.s32.totalorder 1, %s9
    %p169 = scmp.lt.s32.totalorder %s9, 10
    %p170 = pnand %p168, %p169
    %p171 = pneg %p170
    // Predicated region
    $region29: #{conv_transpose_where.1} parent=5 // pred_check
      _
    $region30: #{conv_transpose_where.1} parent=5 // pred_check_branch
      %173 = sbr.rel (%p170) target = $region32
    $region31: #{conv_transpose_where.1} parent=5 // pred_region
      %s174 = ssub.s32 %s9, 1
      %s175 = smul.u32 14, %s19
      %p176 = scmp.lt.s32.totalorder %s18, 8
      %s177 = scalar_select %p176, %s18, 8
      %p178 = scmp.lt.s32.totalorder %s175, 13
      %s179 = scalar_select %p178, %s175, 13
      %s180 = smul.addr %s179, 4
      %s181 = smul.addr %s177, 56
      %s182 = sadd.s32 %s180, %s181
      %s183 = smul.addr %s182, 4
      %s184 = scalar_lea.vmem %s0, %s183
      %p185 = pneg %p49
      %p186 = pneg %p46
      %p187 = scmp.lt.s32.totalorder %s18, 8
      %s188 = scalar_select %p187, %s18, 8
      %s189 = smul.addr %s188, 320
      %s190 = smul.addr %s189, 4
      %s191 = scalar_lea.vmem %s1, %s190
      %p192 = pneg %p75
      %p193 = pneg %p72
      %p194 = pneg %p96
      %p195 = pneg %p93
      %p196 = pneg %p124
      %p197 = pneg %p121
      %s198 = smul.u32 14, %s19
      %p199 = scmp.lt.s32.totalorder %s18, 8
      %s200 = scalar_select %p199, %s18, 8
      %p201 = scmp.lt.s32.totalorder %s198, 13
      %s202 = scalar_select %p201, %s198, 13
      %s203 = smul.addr %s202, 5
      %s204 = smul.addr %s200, 70
      %s205 = sadd.s32 %s203, %s204
      %s206 = smul.addr %s205, 8
      %s207 = scalar_lea.vmem %s3, %s206
      %s208 = smul.u32 14, %s19
      %p209 = scmp.lt.s32.totalorder %s18, 8
      %s210 = scalar_select %p209, %s18, 8
      %p211 = scmp.lt.s32.totalorder %s208, 13
      %s212 = scalar_select %p211, %s208, 13
      %s213 = smul.addr %s212, 4
      %s214 = smul.addr %s210, 56
      %s215 = sadd.s32 %s213, %s214
      %s216 = smul.addr %s215, 4
      %s217 = scalar_lea.vmem %s0, %s216
      %s218 = smul.u32 14, %s19
      %p219 = scmp.lt.s32.totalorder %s18, 8
      %s220 = scalar_select %p219, %s18, 8
      %s221 = smul.addr %s220, 320
      %s222 = smul.addr %s221, 4
      %s223 = scalar_lea.vmem %s1, %s222
      %s224 = smul.u32 14, %s19
      %p225 = scmp.lt.s32.totalorder %s18, 8
      %s226 = scalar_select %p225, %s18, 8
      %p227 = scmp.lt.s32.totalorder %s224, 13
      %s228 = scalar_select %p227, %s224, 13
      %s229 = smul.addr %s228, 5
      %s230 = smul.addr %s226, 70
      %s231 = sadd.s32 %s229, %s230
      %s232 = smul.addr %s231, 8
      %s233 = scalar_lea.vmem %s3, %s232
      %s234 = smul.u32 14, %s19
      %v236 = vld [vmem:[%s217] sm:$0xff]
      %v237 = vld [vmem:[%s217 + $0x8] sm:$0xff]
      %v238 = vld [vmem:[%s217 + $0x10] sm:$0xff]
      %v239 = vld [vmem:[%s217 + $0x18] sm:$0xff]
      %v240 = vld [vmem:[%s217 + $0x20] sm:$0xff]
      %v241 = vld [vmem:[%s217 + $0x28] sm:$0xff]
      %v242 = vld [vmem:[%s217 + $0x30] sm:$0xff]
      %v243 = vld [vmem:[%s217 + $0x38] sm:$0xff]
      %v244 = vld [vmem:[%s217 + $0x40] sm:$0xff]
      %v245 = vld [vmem:[%s217 + $0x48] sm:$0xff]
      %v246 = vld [vmem:[%s217 + $0x50] sm:$0xff]
      %v247 = vld [vmem:[%s217 + $0x58] sm:$0xff]
      %v248 = vld [vmem:[%s217 + $0x60] sm:$0xff]
      %v249 = vld [vmem:[%s217 + $0x68] sm:$0xff]
      %v250 = vld [vmem:[%s217 + $0x70] sm:$0xff]
      %v251 = vld [vmem:[%s217 + $0x78] sm:$0xff]
      %v252 = vld [vmem:[%s217 + $0x80] sm:$0xff]
      %v253 = vld [vmem:[%s217 + $0x88] sm:$0xff]
      %v254 = vld [vmem:[%s217 + $0x90] sm:$0xff]
      %v255 = vld [vmem:[%s217 + $0x98] sm:$0xff]
      %v256 = vld [vmem:[%s217 + $0xa0] sm:$0xff]
      %v257 = vld [vmem:[%s217 + $0xa8] sm:$0xff]
      %v258 = vld [vmem:[%s217 + $0xb0] sm:$0xff]
      %v259 = vld [vmem:[%s217 + $0xb8] sm:$0xff]
      %v260 = vld [vmem:[%s217 + $0xc0] sm:$0xff]
      %v261 = vld [vmem:[%s217 + $0xc8] sm:$0xff]
      %v262 = vld [vmem:[%s217 + $0xd0] sm:$0xff]
      %v263 = vld [vmem:[%s217 + $0xd8] sm:$0xff]
      %v264 = vld [vmem:[%s223] sm:$0xff]
      %v265 = vld [vmem:[%s223 + $0x8] sm:$0xff]
      %v266 = vld [vmem:[%s223 + $0x10] sm:$0xf]
      %v267 = vld [vmem:[%s223 + $0x14] sm:$0xff]
      %v268 = vld [vmem:[%s223 + $0x1c] sm:$0xff]
      %v269 = vld [vmem:[%s223 + $0x24] sm:$0xf]
      %v270 = vld [vmem:[%s223 + $0x28] sm:$0xff]
      %v271 = vld [vmem:[%s223 + $0x30] sm:$0xff]
      %v272 = vld [vmem:[%s223 + $0x38] sm:$0xf]
      %v273 = vld [vmem:[%s223 + $0x3c] sm:$0xff]
      %v274 = vld [vmem:[%s223 + $0x44] sm:$0xff]
      %v275 = vld [vmem:[%s223 + $0x4c] sm:$0xf]
      %v276 = vld [vmem:[%s223 + $0x50] sm:$0xff]
      %v277 = vld [vmem:[%s223 + $0x58] sm:$0xff]
      %v278 = vld [vmem:[%s223 + $0x60] sm:$0xf]
      %v279 = vld [vmem:[%s223 + $0x64] sm:$0xff]
      %v280 = vld [vmem:[%s223 + $0x6c] sm:$0xff]
      %v281 = vld [vmem:[%s223 + $0x74] sm:$0xf]
      %v282 = vld [vmem:[%s223 + $0x78] sm:$0xff]
      %v283 = vld [vmem:[%s223 + $0x80] sm:$0xff]
      %v284 = vld [vmem:[%s223 + $0x88] sm:$0xf]
      %v285 = vld [vmem:[%s223 + $0x8c] sm:$0xff]
      %v286 = vld [vmem:[%s223 + $0x94] sm:$0xff]
      %v287 = vld [vmem:[%s223 + $0x9c] sm:$0xf]
      %v288 = vld [vmem:[%s223 + $0xa0] sm:$0xff]
      %v289 = vld [vmem:[%s223 + $0xa8] sm:$0xff]
      %v290 = vld [vmem:[%s223 + $0xb0] sm:$0xf]
      %v291 = vld [vmem:[%s223 + $0xb4] sm:$0xff]
      %v292 = vld [vmem:[%s223 + $0xbc] sm:$0xff]
      %v293 = vld [vmem:[%s223 + $0xc4] sm:$0xf]
      %v294 = vld [vmem:[%s223 + $0xc8] sm:$0xff]
      %v295 = vld [vmem:[%s223 + $0xd0] sm:$0xff]
      %v296 = vld [vmem:[%s223 + $0xd8] sm:$0xf]
      %v297 = vld [vmem:[%s223 + $0xdc] sm:$0xff]
      %v298 = vld [vmem:[%s223 + $0xe4] sm:$0xff]
      %v299 = vld [vmem:[%s223 + $0xec] sm:$0xf]
      %v300 = vld [vmem:[%s223 + $0xf0] sm:$0xff]
      %v301 = vld [vmem:[%s223 + $0xf8] sm:$0xff]
      %v302 = vld [vmem:[%s223 + $0x100] sm:$0xf]
      %v303 = vld [vmem:[%s223 + $0x104] sm:$0xff]
      %v304 = vld [vmem:[%s223 + $0x10c] sm:$0xff]
      %v305 = vld [vmem:[%s223 + $0x114] sm:$0xf]
      %v306 = vld [vmem:[%s223 + $0x118] sm:$0xff]
      %v307 = vld [vmem:[%s223 + $0x120] sm:$0xff]
      %v308 = vld [vmem:[%s223 + $0x128] sm:$0xf]
      %v309 = vld [vmem:[%s223 + $0x12c] sm:$0xff]
      %v310 = vld [vmem:[%s223 + $0x134] sm:$0xff]
      %v311 = vld [vmem:[%s223 + $0x13c] sm:$0xf]
      %v312 = vld [vmem:[%s223 + $0x140] sm:$0xff]
      %v313 = vld [vmem:[%s223 + $0x148] sm:$0xff]
      %v314 = vld [vmem:[%s223 + $0x150] sm:$0xf]
      %v315 = vld [vmem:[%s223 + $0x154] sm:$0xff]
      %v316 = vld [vmem:[%s223 + $0x15c] sm:$0xff]
      %v317 = vld [vmem:[%s223 + $0x164] sm:$0xf]
      %v318 = vld [vmem:[%s223 + $0x168] sm:$0xff]
      %v319 = vld [vmem:[%s223 + $0x170] sm:$0xff]
      %v320 = vld [vmem:[%s223 + $0x178] sm:$0xf]
      %v321 = vld [vmem:[%s223 + $0x17c] sm:$0xff]
      %v322 = vld [vmem:[%s223 + $0x184] sm:$0xff]
      %v323 = vld [vmem:[%s223 + $0x18c] sm:$0xf]
      %v324 = vld [vmem:[%s223 + $0x190] sm:$0xff]
      %v325 = vld [vmem:[%s223 + $0x198] sm:$0xff]
      %v326 = vld [vmem:[%s223 + $0x1a0] sm:$0xf]
      %v327 = vld [vmem:[%s223 + $0x1a4] sm:$0xff]
      %v328 = vld [vmem:[%s223 + $0x1ac] sm:$0xff]
      %v329 = vld [vmem:[%s223 + $0x1b4] sm:$0xf]
      %v330 = vld [vmem:[%s223 + $0x1b8] sm:$0xff]
      %v331 = vld [vmem:[%s223 + $0x1c0] sm:$0xff]
      %v332 = vld [vmem:[%s223 + $0x1c8] sm:$0xf]
      %v333 = vld [vmem:[%s223 + $0x1cc] sm:$0xff]
      %v334 = vld [vmem:[%s223 + $0x1d4] sm:$0xff]
      %v335 = vld [vmem:[%s223 + $0x1dc] sm:$0xf]
      %v336 = vld [vmem:[%s223 + $0x1e0] sm:$0xff]
      %v337 = vld [vmem:[%s223 + $0x1e8] sm:$0xff]
      %v338 = vld [vmem:[%s223 + $0x1f0] sm:$0xf]
      %v339 = vld [vmem:[%s223 + $0x1f4] sm:$0xff]
      %v340 = vld [vmem:[%s223 + $0x1fc] sm:$0xff]
      %v341 = vld [vmem:[%s223 + $0x204] sm:$0xf]
      %v342 = vld [vmem:[%s223 + $0x208] sm:$0xff]
      %v343 = vld [vmem:[%s223 + $0x210] sm:$0xff]
      %v344 = vld [vmem:[%s223 + $0x218] sm:$0xf]
      %v345 = vld [vmem:[%s223 + $0x21c] sm:$0xff]
      %v346 = vld [vmem:[%s223 + $0x224] sm:$0xff]
      %v347 = vld [vmem:[%s223 + $0x22c] sm:$0xf]
      %v348 = vld [vmem:[%s223 + $0x230] sm:$0xff]
      %v349 = vld [vmem:[%s223 + $0x238] sm:$0xff]
      %v350 = vld [vmem:[%s223 + $0x240] sm:$0xf]
      %v351 = vld [vmem:[%s223 + $0x244] sm:$0xff]
      %v352 = vld [vmem:[%s223 + $0x24c] sm:$0xff]
      %v353 = vld [vmem:[%s223 + $0x254] sm:$0xf]
      %v354 = vld [vmem:[%s223 + $0x258] sm:$0xff]
      %v355 = vld [vmem:[%s223 + $0x260] sm:$0xff]
      %v356 = vld [vmem:[%s223 + $0x268] sm:$0xf]
      %v357 = vld [vmem:[%s223 + $0x26c] sm:$0xff]
      %v358 = vld [vmem:[%s223 + $0x274] sm:$0xff]
      %v359 = vld [vmem:[%s223 + $0x27c] sm:$0xf]
      %v360 = vld [vmem:[%s223 + $0x280] sm:$0xff]
      %v361 = vld [vmem:[%s223 + $0x288] sm:$0xff]
      %v362 = vld [vmem:[%s223 + $0x290] sm:$0xf]
      %v363 = vld [vmem:[%s223 + $0x294] sm:$0xff]
      %v364 = vld [vmem:[%s223 + $0x29c] sm:$0xff]
      %v365 = vld [vmem:[%s223 + $0x2a4] sm:$0xf]
      %v366 = vld [vmem:[%s223 + $0x2a8] sm:$0xff]
      %v367 = vld [vmem:[%s223 + $0x2b0] sm:$0xff]
      %v368 = vld [vmem:[%s223 + $0x2b8] sm:$0xf]
      %v369 = vld [vmem:[%s223 + $0x2bc] sm:$0xff]
      %v370 = vld [vmem:[%s223 + $0x2c4] sm:$0xff]
      %v371 = vld [vmem:[%s223 + $0x2cc] sm:$0xf]
      %v372 = vld [vmem:[%s223 + $0x2d0] sm:$0xff]
      %v373 = vld [vmem:[%s223 + $0x2d8] sm:$0xff]
      %v374 = vld [vmem:[%s223 + $0x2e0] sm:$0xf]
      %v375 = vld [vmem:[%s223 + $0x2e4] sm:$0xff]
      %v376 = vld [vmem:[%s223 + $0x2ec] sm:$0xff]
      %v377 = vld [vmem:[%s223 + $0x2f4] sm:$0xf]
      %v378 = vld [vmem:[%s223 + $0x2f8] sm:$0xff]
      %v379 = vld [vmem:[%s223 + $0x300] sm:$0xff]
      %v380 = vld [vmem:[%s223 + $0x308] sm:$0xf]
      %v381 = vld [vmem:[%s223 + $0x30c] sm:$0xff]
      %v382 = vld [vmem:[%s223 + $0x314] sm:$0xff]
      %v383 = vld [vmem:[%s223 + $0x31c] sm:$0xf]
      %v384 = vld [vmem:[%s223 + $0x320] sm:$0xff]
      %v385 = vld [vmem:[%s223 + $0x328] sm:$0xff]
      %v386 = vld [vmem:[%s223 + $0x330] sm:$0xf]
      %v387 = vld [vmem:[%s223 + $0x334] sm:$0xff]
      %v388 = vld [vmem:[%s223 + $0x33c] sm:$0xff]
      %v389 = vld [vmem:[%s223 + $0x344] sm:$0xf]
      %v390 = vld [vmem:[%s223 + $0x348] sm:$0xff]
      %v391 = vld [vmem:[%s223 + $0x350] sm:$0xff]
      %v392 = vld [vmem:[%s223 + $0x358] sm:$0xf]
      %v393 = vld [vmem:[%s223 + $0x35c] sm:$0xff]
      %v394 = vld [vmem:[%s223 + $0x364] sm:$0xff]
      %v395 = vld [vmem:[%s223 + $0x36c] sm:$0xf]
      %v396 = vld [vmem:[%s223 + $0x370] sm:$0xff]
      %v397 = vld [vmem:[%s223 + $0x378] sm:$0xff]
      %v398 = vld [vmem:[%s223 + $0x380] sm:$0xf]
      %v399 = vld [vmem:[%s223 + $0x384] sm:$0xff]
      %v400 = vld [vmem:[%s223 + $0x38c] sm:$0xff]
      %v401 = vld [vmem:[%s223 + $0x394] sm:$0xf]
      %v402 = vld [vmem:[%s223 + $0x398] sm:$0xff]
      %v403 = vld [vmem:[%s223 + $0x3a0] sm:$0xff]
      %v404 = vld [vmem:[%s223 + $0x3a8] sm:$0xf]
      %v405 = vld [vmem:[%s223 + $0x3ac] sm:$0xff]
      %v406 = vld [vmem:[%s223 + $0x3b4] sm:$0xff]
      %v407 = vld [vmem:[%s223 + $0x3bc] sm:$0xf]
      %v408 = vld [vmem:[%s223 + $0x3c0] sm:$0xff]
      %v409 = vld [vmem:[%s223 + $0x3c8] sm:$0xff]
      %v410 = vld [vmem:[%s223 + $0x3d0] sm:$0xf]
      %v411 = vld [vmem:[%s223 + $0x3d4] sm:$0xff]
      %v412 = vld [vmem:[%s223 + $0x3dc] sm:$0xff]
      %v413 = vld [vmem:[%s223 + $0x3e4] sm:$0xf]
      %v414 = vld [vmem:[%s223 + $0x3e8] sm:$0xff]
      %v415 = vld [vmem:[%s223 + $0x3f0] sm:$0xff]
      %v416 = vld [vmem:[%s223 + $0x3f8] sm:$0xf]
      %v417 = vld [vmem:[%s223 + $0x3fc] sm:$0xff]
      %v418 = vld [vmem:[%s223 + $0x404] sm:$0xff]
      %v419 = vld [vmem:[%s223 + $0x40c] sm:$0xf]
      %v420 = vld [vmem:[%s223 + $0x410] sm:$0xff]
      %v421 = vld [vmem:[%s223 + $0x418] sm:$0xff]
      %v422 = vld [vmem:[%s223 + $0x420] sm:$0xf]
      %v423 = vld [vmem:[%s223 + $0x424] sm:$0xff]
      %v424 = vld [vmem:[%s223 + $0x42c] sm:$0xff]
      %v425 = vld [vmem:[%s223 + $0x434] sm:$0xf]
      %v426 = vld [vmem:[%s223 + $0x438] sm:$0xff]
      %v427 = vld [vmem:[%s223 + $0x440] sm:$0xff]
      %v428 = vld [vmem:[%s223 + $0x448] sm:$0xf]
      %v429 = vld [vmem:[%s223 + $0x44c] sm:$0xff]
      %v430 = vld [vmem:[%s223 + $0x454] sm:$0xff]
      %v431 = vld [vmem:[%s223 + $0x45c] sm:$0xf]
      %v432 = vld [vmem:[%s223 + $0x460] sm:$0xff]
      %v433 = vld [vmem:[%s223 + $0x468] sm:$0xff]
      %v434 = vld [vmem:[%s223 + $0x470] sm:$0xf]
      %v435 = vld [vmem:[%s223 + $0x474] sm:$0xff]
      %v436 = vld [vmem:[%s223 + $0x47c] sm:$0xff]
      %v437 = vld [vmem:[%s223 + $0x484] sm:$0xf]
      %v438 = vld [vmem:[%s223 + $0x488] sm:$0xff]
      %v439 = vld [vmem:[%s223 + $0x490] sm:$0xff]
      %v440 = vld [vmem:[%s223 + $0x498] sm:$0xf]
      %v441 = vld [vmem:[%s223 + $0x49c] sm:$0xff]
      %v442 = vld [vmem:[%s223 + $0x4a4] sm:$0xff]
      %v443 = vld [vmem:[%s223 + $0x4ac] sm:$0xf]
      %v444 = vld [vmem:[%s223 + $0x4b0] sm:$0xff]
      %v445 = vld [vmem:[%s223 + $0x4b8] sm:$0xff]
      %v446 = vld [vmem:[%s223 + $0x4c0] sm:$0xf]
      %v447 = vld [vmem:[%s223 + $0x4c4] sm:$0xff]
      %v448 = vld [vmem:[%s223 + $0x4cc] sm:$0xff]
      %v449 = vld [vmem:[%s223 + $0x4d4] sm:$0xf]
      %v450 = vld [vmem:[%s223 + $0x4d8] sm:$0xff]
      %v451 = vld [vmem:[%s223 + $0x4e0] sm:$0xff]
      %v452 = vld [vmem:[%s223 + $0x4e8] sm:$0xf]
      %v453 = vld [vmem:[%s223 + $0x4ec] sm:$0xff]
      %v454 = vld [vmem:[%s223 + $0x4f4] sm:$0xff]
      %v455 = vld [vmem:[%s223 + $0x4fc] sm:$0xf]
      %v456 = vld [vmem:[%s2] sm:$0x1f]
      %v458 = vlaneseq
      %v459 = vshrl.u32 %v458, 7
      %v460 = vsub.s32 0, %v459
      %v461 = vrot.slane %v456, %v460
      %v462 = vlaneseq
      %v463 = vshrl.u32 %v462, 7
      %v464 = vsub.s32 1, %v463
      %v465 = vrot.slane %v456, %v464
      %v466 = vlaneseq
      %v467 = vshrl.u32 %v466, 7
      %v468 = vsub.s32 2, %v467
      %v469 = vrot.slane %v456, %v468
      %v470 = vlaneseq
      %v471 = vshrl.u32 %v470, 7
      %v472 = vsub.s32 3, %v471
      %v473 = vrot.slane %v456, %v472
      %v474 = vlaneseq
      %v475 = vshrl.u32 %v474, 7
      %v476 = vsub.s32 4, %v475
      %v477 = vrot.slane %v456, %v476
      %v511 = vunpack.c.l.b16 %v236
      %v512 = vunpack.c.h.b16 %v236
      %v513 = vunpack.c.l.b16 %v237
      %v514 = vunpack.c.h.b16 %v237
      %v515 = vunpack.c.l.b16 %v238
      %v516 = vunpack.c.h.b16 %v238
      %v517 = vunpack.c.l.b16 %v239
      %v518 = vunpack.c.h.b16 %v239
      %v519 = vunpack.c.l.b16 %v240
      %v520 = vunpack.c.h.b16 %v240
      %v521 = vunpack.c.l.b16 %v241
      %v522 = vunpack.c.h.b16 %v241
      %v523 = vunpack.c.l.b16 %v242
      %v524 = vunpack.c.h.b16 %v242
      %v525 = vunpack.c.l.b16 %v243
      %v526 = vunpack.c.h.b16 %v243
      %v527 = vunpack.c.l.b16 %v244
      %v528 = vunpack.c.h.b16 %v244
      %v529 = vunpack.c.l.b16 %v245
      %v530 = vunpack.c.h.b16 %v245
      %v531 = vunpack.c.l.b16 %v246
      %v532 = vunpack.c.h.b16 %v246
      %v533 = vunpack.c.l.b16 %v247
      %v534 = vunpack.c.h.b16 %v247
      %v535 = vunpack.c.l.b16 %v248
      %v536 = vunpack.c.h.b16 %v248
      %v537 = vunpack.c.l.b16 %v249
      %v538 = vunpack.c.h.b16 %v249
      %v539 = vunpack.c.l.b16 %v250
      %v540 = vunpack.c.h.b16 %v250
      %v541 = vunpack.c.l.b16 %v251
      %v542 = vunpack.c.h.b16 %v251
      %v543 = vunpack.c.l.b16 %v252
      %v544 = vunpack.c.h.b16 %v252
      %v545 = vunpack.c.l.b16 %v253
      %v546 = vunpack.c.h.b16 %v253
      %v547 = vunpack.c.l.b16 %v254
      %v548 = vunpack.c.h.b16 %v254
      %v549 = vunpack.c.l.b16 %v255
      %v550 = vunpack.c.h.b16 %v255
      %v551 = vunpack.c.l.b16 %v256
      %v552 = vunpack.c.h.b16 %v256
      %v553 = vunpack.c.l.b16 %v257
      %v554 = vunpack.c.h.b16 %v257
      %v555 = vunpack.c.l.b16 %v258
      %v556 = vunpack.c.h.b16 %v258
      %v557 = vunpack.c.l.b16 %v259
      %v558 = vunpack.c.h.b16 %v259
      %v559 = vunpack.c.l.b16 %v260
      %v560 = vunpack.c.h.b16 %v260
      %v561 = vunpack.c.l.b16 %v261
      %v562 = vunpack.c.h.b16 %v261
      %v563 = vunpack.c.l.b16 %v262
      %v564 = vunpack.c.h.b16 %v262
      %v565 = vunpack.c.l.b16 %v263
      %v566 = vunpack.c.h.b16 %v263
      %v567 = vpack.c.b16 %v515, %v511
      %v568 = vpack.c.b16 %v516, %v512
      %v569 = vpack.c.b16 %v517, %v513
      %v570 = vpack.c.b16 %v518, %v514
      %v571 = vpack.c.b16 %v523, %v519
      %v572 = vpack.c.b16 %v524, %v520
      %v573 = vpack.c.b16 %v525, %v521
      %v574 = vpack.c.b16 %v526, %v522
      %v575 = vpack.c.b16 %v531, %v527
      %v576 = vpack.c.b16 %v532, %v528
      %v577 = vpack.c.b16 %v533, %v529
      %v578 = vpack.c.b16 %v534, %v530
      %v579 = vpack.c.b16 %v539, %v535
      %v580 = vpack.c.b16 %v540, %v536
      %v581 = vpack.c.b16 %v541, %v537
      %v582 = vpack.c.b16 %v542, %v538
      %v583 = vpack.c.b16 %v547, %v543
      %v584 = vpack.c.b16 %v548, %v544
      %v585 = vpack.c.b16 %v549, %v545
      %v586 = vpack.c.b16 %v550, %v546
      %v587 = vpack.c.b16 %v555, %v551
      %v588 = vpack.c.b16 %v556, %v552
      %v589 = vpack.c.b16 %v557, %v553
      %v590 = vpack.c.b16 %v558, %v554
      %v591 = vpack.c.b16 %v563, %v559
      %v592 = vpack.c.b16 %v564, %v560
      %v593 = vpack.c.b16 %v565, %v561
      %v594 = vpack.c.b16 %v566, %v562
      %v815 = vunpack.c.l.b16 %v264
      %v816 = vunpack.c.h.b16 %v264
      %v817 = vunpack.c.l.b16 %v265
      %v818 = vunpack.c.h.b16 %v265
      %v819 = vunpack.c.l.b16 %v266
      %v820 = vunpack.c.l.b16 %v267
      %v821 = vunpack.c.h.b16 %v267
      %v822 = vunpack.c.l.b16 %v268
      %v823 = vunpack.c.h.b16 %v268
      %v824 = vunpack.c.l.b16 %v269
      %v825 = vunpack.c.l.b16 %v270
      %v826 = vunpack.c.h.b16 %v270
      %v827 = vunpack.c.l.b16 %v271
      %v828 = vunpack.c.h.b16 %v271
      %v829 = vunpack.c.l.b16 %v272
      %v830 = vunpack.c.l.b16 %v273
      %v831 = vunpack.c.h.b16 %v273
      %v832 = vunpack.c.l.b16 %v274
      %v833 = vunpack.c.h.b16 %v274
      %v834 = vunpack.c.l.b16 %v275
      %v835 = vunpack.c.l.b16 %v276
      %v836 = vunpack.c.h.b16 %v276
      %v837 = vunpack.c.l.b16 %v277
      %v838 = vunpack.c.h.b16 %v277
      %v839 = vunpack.c.l.b16 %v278
      %v840 = vunpack.c.l.b16 %v279
      %v841 = vunpack.c.h.b16 %v279
      %v842 = vunpack.c.l.b16 %v280
      %v843 = vunpack.c.h.b16 %v280
      %v844 = vunpack.c.l.b16 %v281
      %v845 = vunpack.c.l.b16 %v282
      %v846 = vunpack.c.h.b16 %v282
      %v847 = vunpack.c.l.b16 %v283
      %v848 = vunpack.c.h.b16 %v283
      %v849 = vunpack.c.l.b16 %v284
      %v850 = vunpack.c.l.b16 %v285
      %v851 = vunpack.c.h.b16 %v285
      %v852 = vunpack.c.l.b16 %v286
      %v853 = vunpack.c.h.b16 %v286
      %v854 = vunpack.c.l.b16 %v287
      %v855 = vunpack.c.l.b16 %v288
      %v856 = vunpack.c.h.b16 %v288
      %v857 = vunpack.c.l.b16 %v289
      %v858 = vunpack.c.h.b16 %v289
      %v859 = vunpack.c.l.b16 %v290
      %v860 = vunpack.c.l.b16 %v291
      %v861 = vunpack.c.h.b16 %v291
      %v862 = vunpack.c.l.b16 %v292
      %v863 = vunpack.c.h.b16 %v292
      %v864 = vunpack.c.l.b16 %v293
      %v865 = vunpack.c.l.b16 %v294
      %v866 = vunpack.c.h.b16 %v294
      %v867 = vunpack.c.l.b16 %v295
      %v868 = vunpack.c.h.b16 %v295
      %v869 = vunpack.c.l.b16 %v296
      %v870 = vunpack.c.l.b16 %v297
      %v871 = vunpack.c.h.b16 %v297
      %v872 = vunpack.c.l.b16 %v298
      %v873 = vunpack.c.h.b16 %v298
      %v874 = vunpack.c.l.b16 %v299
      %v875 = vunpack.c.l.b16 %v300
      %v876 = vunpack.c.h.b16 %v300
      %v877 = vunpack.c.l.b16 %v301
      %v878 = vunpack.c.h.b16 %v301
      %v879 = vunpack.c.l.b16 %v302
      %v880 = vunpack.c.l.b16 %v303
      %v881 = vunpack.c.h.b16 %v303
      %v882 = vunpack.c.l.b16 %v304
      %v883 = vunpack.c.h.b16 %v304
      %v884 = vunpack.c.l.b16 %v305
      %v885 = vunpack.c.l.b16 %v306
      %v886 = vunpack.c.h.b16 %v306
      %v887 = vunpack.c.l.b16 %v307
      %v888 = vunpack.c.h.b16 %v307
      %v889 = vunpack.c.l.b16 %v308
      %v890 = vunpack.c.l.b16 %v309
      %v891 = vunpack.c.h.b16 %v309
      %v892 = vunpack.c.l.b16 %v310
      %v893 = vunpack.c.h.b16 %v310
      %v894 = vunpack.c.l.b16 %v311
      %v895 = vunpack.c.l.b16 %v312
      %v896 = vunpack.c.h.b16 %v312
      %v897 = vunpack.c.l.b16 %v313
      %v898 = vunpack.c.h.b16 %v313
      %v899 = vunpack.c.l.b16 %v314
      %v900 = vunpack.c.l.b16 %v315
      %v901 = vunpack.c.h.b16 %v315
      %v902 = vunpack.c.l.b16 %v316
      %v903 = vunpack.c.h.b16 %v316
      %v904 = vunpack.c.l.b16 %v317
      %v905 = vunpack.c.l.b16 %v318
      %v906 = vunpack.c.h.b16 %v318
      %v907 = vunpack.c.l.b16 %v319
      %v908 = vunpack.c.h.b16 %v319
      %v909 = vunpack.c.l.b16 %v320
      %v910 = vunpack.c.l.b16 %v321
      %v911 = vunpack.c.h.b16 %v321
      %v912 = vunpack.c.l.b16 %v322
      %v913 = vunpack.c.h.b16 %v322
      %v914 = vunpack.c.l.b16 %v323
      %v915 = vunpack.c.l.b16 %v324
      %v916 = vunpack.c.h.b16 %v324
      %v917 = vunpack.c.l.b16 %v325
      %v918 = vunpack.c.h.b16 %v325
      %v919 = vunpack.c.l.b16 %v326
      %v920 = vunpack.c.l.b16 %v327
      %v921 = vunpack.c.h.b16 %v327
      %v922 = vunpack.c.l.b16 %v328
      %v923 = vunpack.c.h.b16 %v328
      %v924 = vunpack.c.l.b16 %v329
      %v925 = vunpack.c.l.b16 %v330
      %v926 = vunpack.c.h.b16 %v330
      %v927 = vunpack.c.l.b16 %v331
      %v928 = vunpack.c.h.b16 %v331
      %v929 = vunpack.c.l.b16 %v332
      %v930 = vunpack.c.l.b16 %v333
      %v931 = vunpack.c.h.b16 %v333
      %v932 = vunpack.c.l.b16 %v334
      %v933 = vunpack.c.h.b16 %v334
      %v934 = vunpack.c.l.b16 %v335
      %v935 = vunpack.c.l.b16 %v336
      %v936 = vunpack.c.h.b16 %v336
      %v937 = vunpack.c.l.b16 %v337
      %v938 = vunpack.c.h.b16 %v337
      %v939 = vunpack.c.l.b16 %v338
      %v940 = vunpack.c.l.b16 %v339
      %v941 = vunpack.c.h.b16 %v339
      %v942 = vunpack.c.l.b16 %v340
      %v943 = vunpack.c.h.b16 %v340
      %v944 = vunpack.c.l.b16 %v341
      %v945 = vunpack.c.l.b16 %v342
      %v946 = vunpack.c.h.b16 %v342
      %v947 = vunpack.c.l.b16 %v343
      %v948 = vunpack.c.h.b16 %v343
      %v949 = vunpack.c.l.b16 %v344
      %v950 = vunpack.c.l.b16 %v345
      %v951 = vunpack.c.h.b16 %v345
      %v952 = vunpack.c.l.b16 %v346
      %v953 = vunpack.c.h.b16 %v346
      %v954 = vunpack.c.l.b16 %v347
      %v955 = vunpack.c.l.b16 %v348
      %v956 = vunpack.c.h.b16 %v348
      %v957 = vunpack.c.l.b16 %v349
      %v958 = vunpack.c.h.b16 %v349
      %v959 = vunpack.c.l.b16 %v350
      %v960 = vunpack.c.l.b16 %v351
      %v961 = vunpack.c.h.b16 %v351
      %v962 = vunpack.c.l.b16 %v352
      %v963 = vunpack.c.h.b16 %v352
      %v964 = vunpack.c.l.b16 %v353
      %v965 = vunpack.c.l.b16 %v354
      %v966 = vunpack.c.h.b16 %v354
      %v967 = vunpack.c.l.b16 %v355
      %v968 = vunpack.c.h.b16 %v355
      %v969 = vunpack.c.l.b16 %v356
      %v970 = vunpack.c.l.b16 %v357
      %v971 = vunpack.c.h.b16 %v357
      %v972 = vunpack.c.l.b16 %v358
      %v973 = vunpack.c.h.b16 %v358
      %v974 = vunpack.c.l.b16 %v359
      %v975 = vunpack.c.l.b16 %v360
      %v976 = vunpack.c.h.b16 %v360
      %v977 = vunpack.c.l.b16 %v361
      %v978 = vunpack.c.h.b16 %v361
      %v979 = vunpack.c.l.b16 %v362
      %v980 = vunpack.c.l.b16 %v363
      %v981 = vunpack.c.h.b16 %v363
      %v982 = vunpack.c.l.b16 %v364
      %v983 = vunpack.c.h.b16 %v364
      %v984 = vunpack.c.l.b16 %v365
      %v985 = vunpack.c.l.b16 %v366
      %v986 = vunpack.c.h.b16 %v366
      %v987 = vunpack.c.l.b16 %v367
      %v988 = vunpack.c.h.b16 %v367
      %v989 = vunpack.c.l.b16 %v368
      %v990 = vunpack.c.l.b16 %v369
      %v991 = vunpack.c.h.b16 %v369
      %v992 = vunpack.c.l.b16 %v370
      %v993 = vunpack.c.h.b16 %v370
      %v994 = vunpack.c.l.b16 %v371
      %v995 = vunpack.c.l.b16 %v372
      %v996 = vunpack.c.h.b16 %v372
      %v997 = vunpack.c.l.b16 %v373
      %v998 = vunpack.c.h.b16 %v373
      %v999 = vunpack.c.l.b16 %v374
      %v1000 = vunpack.c.l.b16 %v375
      %v1001 = vunpack.c.h.b16 %v375
      %v1002 = vunpack.c.l.b16 %v376
      %v1003 = vunpack.c.h.b16 %v376
      %v1004 = vunpack.c.l.b16 %v377
      %v1005 = vunpack.c.l.b16 %v378
      %v1006 = vunpack.c.h.b16 %v378
      %v1007 = vunpack.c.l.b16 %v379
      %v1008 = vunpack.c.h.b16 %v379
      %v1009 = vunpack.c.l.b16 %v380
      %v1010 = vunpack.c.l.b16 %v381
      %v1011 = vunpack.c.h.b16 %v381
      %v1012 = vunpack.c.l.b16 %v382
      %v1013 = vunpack.c.h.b16 %v382
      %v1014 = vunpack.c.l.b16 %v383
      %v1015 = vunpack.c.l.b16 %v384
      %v1016 = vunpack.c.h.b16 %v384
      %v1017 = vunpack.c.l.b16 %v385
      %v1018 = vunpack.c.h.b16 %v385
      %v1019 = vunpack.c.l.b16 %v386
      %v1020 = vunpack.c.l.b16 %v387
      %v1021 = vunpack.c.h.b16 %v387
      %v1022 = vunpack.c.l.b16 %v388
      %v1023 = vunpack.c.h.b16 %v388
      %v1024 = vunpack.c.l.b16 %v389
      %v1025 = vunpack.c.l.b16 %v390
      %v1026 = vunpack.c.h.b16 %v390
      %v1027 = vunpack.c.l.b16 %v391
      %v1028 = vunpack.c.h.b16 %v391
      %v1029 = vunpack.c.l.b16 %v392
      %v1030 = vunpack.c.l.b16 %v393
      %v1031 = vunpack.c.h.b16 %v393
      %v1032 = vunpack.c.l.b16 %v394
      %v1033 = vunpack.c.h.b16 %v394
      %v1034 = vunpack.c.l.b16 %v395
      %v1035 = vunpack.c.l.b16 %v396
      %v1036 = vunpack.c.h.b16 %v396
      %v1037 = vunpack.c.l.b16 %v397
      %v1038 = vunpack.c.h.b16 %v397
      %v1039 = vunpack.c.l.b16 %v398
      %v1040 = vunpack.c.l.b16 %v399
      %v1041 = vunpack.c.h.b16 %v399
      %v1042 = vunpack.c.l.b16 %v400
      %v1043 = vunpack.c.h.b16 %v400
      %v1044 = vunpack.c.l.b16 %v401
      %v1045 = vunpack.c.l.b16 %v402
      %v1046 = vunpack.c.h.b16 %v402
      %v1047 = vunpack.c.l.b16 %v403
      %v1048 = vunpack.c.h.b16 %v403
      %v1049 = vunpack.c.l.b16 %v404
      %v1050 = vunpack.c.l.b16 %v405
      %v1051 = vunpack.c.h.b16 %v405
      %v1052 = vunpack.c.l.b16 %v406
      %v1053 = vunpack.c.h.b16 %v406
      %v1054 = vunpack.c.l.b16 %v407
      %v1055 = vunpack.c.l.b16 %v408
      %v1056 = vunpack.c.h.b16 %v408
      %v1057 = vunpack.c.l.b16 %v409
      %v1058 = vunpack.c.h.b16 %v409
      %v1059 = vunpack.c.l.b16 %v410
      %v1060 = vunpack.c.l.b16 %v411
      %v1061 = vunpack.c.h.b16 %v411
      %v1062 = vunpack.c.l.b16 %v412
      %v1063 = vunpack.c.h.b16 %v412
      %v1064 = vunpack.c.l.b16 %v413
      %v1065 = vunpack.c.l.b16 %v414
      %v1066 = vunpack.c.h.b16 %v414
      %v1067 = vunpack.c.l.b16 %v415
      %v1068 = vunpack.c.h.b16 %v415
      %v1069 = vunpack.c.l.b16 %v416
      %v1070 = vunpack.c.l.b16 %v417
      %v1071 = vunpack.c.h.b16 %v417
      %v1072 = vunpack.c.l.b16 %v418
      %v1073 = vunpack.c.h.b16 %v418
      %v1074 = vunpack.c.l.b16 %v419
      %v1075 = vunpack.c.l.b16 %v420
      %v1076 = vunpack.c.h.b16 %v420
      %v1077 = vunpack.c.l.b16 %v421
      %v1078 = vunpack.c.h.b16 %v421
      %v1079 = vunpack.c.l.b16 %v422
      %v1080 = vunpack.c.l.b16 %v423
      %v1081 = vunpack.c.h.b16 %v423
      %v1082 = vunpack.c.l.b16 %v424
      %v1083 = vunpack.c.h.b16 %v424
      %v1084 = vunpack.c.l.b16 %v425
      %v1085 = vunpack.c.l.b16 %v426
      %v1086 = vunpack.c.h.b16 %v426
      %v1087 = vunpack.c.l.b16 %v427
      %v1088 = vunpack.c.h.b16 %v427
      %v1089 = vunpack.c.l.b16 %v428
      %v1090 = vunpack.c.l.b16 %v429
      %v1091 = vunpack.c.h.b16 %v429
      %v1092 = vunpack.c.l.b16 %v430
      %v1093 = vunpack.c.h.b16 %v430
      %v1094 = vunpack.c.l.b16 %v431
      %v1095 = vunpack.c.l.b16 %v432
      %v1096 = vunpack.c.h.b16 %v432
      %v1097 = vunpack.c.l.b16 %v433
      %v1098 = vunpack.c.h.b16 %v433
      %v1099 = vunpack.c.l.b16 %v434
      %v1100 = vunpack.c.l.b16 %v435
      %v1101 = vunpack.c.h.b16 %v435
      %v1102 = vunpack.c.l.b16 %v436
      %v1103 = vunpack.c.h.b16 %v436
      %v1104 = vunpack.c.l.b16 %v437
      %v1105 = vunpack.c.l.b16 %v438
      %v1106 = vunpack.c.h.b16 %v438
      %v1107 = vunpack.c.l.b16 %v439
      %v1108 = vunpack.c.h.b16 %v439
      %v1109 = vunpack.c.l.b16 %v440
      %v1110 = vunpack.c.l.b16 %v441
      %v1111 = vunpack.c.h.b16 %v441
      %v1112 = vunpack.c.l.b16 %v442
      %v1113 = vunpack.c.h.b16 %v442
      %v1114 = vunpack.c.l.b16 %v443
      %v1115 = vunpack.c.l.b16 %v444
      %v1116 = vunpack.c.h.b16 %v444
      %v1117 = vunpack.c.l.b16 %v445
      %v1118 = vunpack.c.h.b16 %v445
      %v1119 = vunpack.c.l.b16 %v446
      %v1120 = vunpack.c.l.b16 %v447
      %v1121 = vunpack.c.h.b16 %v447
      %v1122 = vunpack.c.l.b16 %v448
      %v1123 = vunpack.c.h.b16 %v448
      %v1124 = vunpack.c.l.b16 %v449
      %v1125 = vunpack.c.l.b16 %v450
      %v1126 = vunpack.c.h.b16 %v450
      %v1127 = vunpack.c.l.b16 %v451
      %v1128 = vunpack.c.h.b16 %v451
      %v1129 = vunpack.c.l.b16 %v452
      %v1130 = vunpack.c.l.b16 %v453
      %v1131 = vunpack.c.h.b16 %v453
      %v1132 = vunpack.c.l.b16 %v454
      %v1133 = vunpack.c.h.b16 %v454
      %v1134 = vunpack.c.l.b16 %v455
      %v1135 = vpack.c.b16 %v820, %v815
      %v1136 = vpack.c.b16 %v821, %v816
      %v1137 = vpack.c.b16 %v822, %v817
      %v1138 = vpack.c.b16 %v823, %v818
      %v1139 = vpack.c.b16 %v824, %v819
      %v1140 = vpack.c.b16 %v830, %v825
      %v1141 = vpack.c.b16 %v831, %v826
      %v1142 = vpack.c.b16 %v832, %v827
      %v1143 = vpack.c.b16 %v833, %v828
      %v1144 = vpack.c.b16 %v834, %v829
      %v1145 = vpack.c.b16 %v840, %v835
      %v1146 = vpack.c.b16 %v841, %v836
      %v1147 = vpack.c.b16 %v842, %v837
      %v1148 = vpack.c.b16 %v843, %v838
      %v1149 = vpack.c.b16 %v844, %v839
      %v1150 = vpack.c.b16 %v850, %v845
      %v1151 = vpack.c.b16 %v851, %v846
      %v1152 = vpack.c.b16 %v852, %v847
      %v1153 = vpack.c.b16 %v853, %v848
      %v1154 = vpack.c.b16 %v854, %v849
      %v1155 = vpack.c.b16 %v860, %v855
      %v1156 = vpack.c.b16 %v861, %v856
      %v1157 = vpack.c.b16 %v862, %v857
      %v1158 = vpack.c.b16 %v863, %v858
      %v1159 = vpack.c.b16 %v864, %v859
      %v1160 = vpack.c.b16 %v870, %v865
      %v1161 = vpack.c.b16 %v871, %v866
      %v1162 = vpack.c.b16 %v872, %v867
      %v1163 = vpack.c.b16 %v873, %v868
      %v1164 = vpack.c.b16 %v874, %v869
      %v1165 = vpack.c.b16 %v880, %v875
      %v1166 = vpack.c.b16 %v881, %v876
      %v1167 = vpack.c.b16 %v882, %v877
      %v1168 = vpack.c.b16 %v883, %v878
      %v1169 = vpack.c.b16 %v884, %v879
      %v1170 = vpack.c.b16 %v890, %v885
      %v1171 = vpack.c.b16 %v891, %v886
      %v1172 = vpack.c.b16 %v892, %v887
      %v1173 = vpack.c.b16 %v893, %v888
      %v1174 = vpack.c.b16 %v894, %v889
      %v1175 = vpack.c.b16 %v900, %v895
      %v1176 = vpack.c.b16 %v901, %v896
      %v1177 = vpack.c.b16 %v902, %v897
      %v1178 = vpack.c.b16 %v903, %v898
      %v1179 = vpack.c.b16 %v904, %v899
      %v1180 = vpack.c.b16 %v910, %v905
      %v1181 = vpack.c.b16 %v911, %v906
      %v1182 = vpack.c.b16 %v912, %v907
      %v1183 = vpack.c.b16 %v913, %v908
      %v1184 = vpack.c.b16 %v914, %v909
      %v1185 = vpack.c.b16 %v920, %v915
      %v1186 = vpack.c.b16 %v921, %v916
      %v1187 = vpack.c.b16 %v922, %v917
      %v1188 = vpack.c.b16 %v923, %v918
      %v1189 = vpack.c.b16 %v924, %v919
      %v1190 = vpack.c.b16 %v930, %v925
      %v1191 = vpack.c.b16 %v931, %v926
      %v1192 = vpack.c.b16 %v932, %v927
      %v1193 = vpack.c.b16 %v933, %v928
      %v1194 = vpack.c.b16 %v934, %v929
      %v1195 = vpack.c.b16 %v940, %v935
      %v1196 = vpack.c.b16 %v941, %v936
      %v1197 = vpack.c.b16 %v942, %v937
      %v1198 = vpack.c.b16 %v943, %v938
      %v1199 = vpack.c.b16 %v944, %v939
      %v1200 = vpack.c.b16 %v950, %v945
      %v1201 = vpack.c.b16 %v951, %v946
      %v1202 = vpack.c.b16 %v952, %v947
      %v1203 = vpack.c.b16 %v953, %v948
      %v1204 = vpack.c.b16 %v954, %v949
      %v1205 = vpack.c.b16 %v960, %v955
      %v1206 = vpack.c.b16 %v961, %v956
      %v1207 = vpack.c.b16 %v962, %v957
      %v1208 = vpack.c.b16 %v963, %v958
      %v1209 = vpack.c.b16 %v964, %v959
      %v1210 = vpack.c.b16 %v970, %v965
      %v1211 = vpack.c.b16 %v971, %v966
      %v1212 = vpack.c.b16 %v972, %v967
      %v1213 = vpack.c.b16 %v973, %v968
      %v1214 = vpack.c.b16 %v974, %v969
      %v1215 = vpack.c.b16 %v980, %v975
      %v1216 = vpack.c.b16 %v981, %v976
      %v1217 = vpack.c.b16 %v982, %v977
      %v1218 = vpack.c.b16 %v983, %v978
      %v1219 = vpack.c.b16 %v984, %v979
      %v1220 = vpack.c.b16 %v990, %v985
      %v1221 = vpack.c.b16 %v991, %v986
      %v1222 = vpack.c.b16 %v992, %v987
      %v1223 = vpack.c.b16 %v993, %v988
      %v1224 = vpack.c.b16 %v994, %v989
      %v1225 = vpack.c.b16 %v1000, %v995
      %v1226 = vpack.c.b16 %v1001, %v996
      %v1227 = vpack.c.b16 %v1002, %v997
      %v1228 = vpack.c.b16 %v1003, %v998
      %v1229 = vpack.c.b16 %v1004, %v999
      %v1230 = vpack.c.b16 %v1010, %v1005
      %v1231 = vpack.c.b16 %v1011, %v1006
      %v1232 = vpack.c.b16 %v1012, %v1007
      %v1233 = vpack.c.b16 %v1013, %v1008
      %v1234 = vpack.c.b16 %v1014, %v1009
      %v1235 = vpack.c.b16 %v1020, %v1015
      %v1236 = vpack.c.b16 %v1021, %v1016
      %v1237 = vpack.c.b16 %v1022, %v1017
      %v1238 = vpack.c.b16 %v1023, %v1018
      %v1239 = vpack.c.b16 %v1024, %v1019
      %v1240 = vpack.c.b16 %v1030, %v1025
      %v1241 = vpack.c.b16 %v1031, %v1026
      %v1242 = vpack.c.b16 %v1032, %v1027
      %v1243 = vpack.c.b16 %v1033, %v1028
      %v1244 = vpack.c.b16 %v1034, %v1029
      %v1245 = vpack.c.b16 %v1040, %v1035
      %v1246 = vpack.c.b16 %v1041, %v1036
      %v1247 = vpack.c.b16 %v1042, %v1037
      %v1248 = vpack.c.b16 %v1043, %v1038
      %v1249 = vpack.c.b16 %v1044, %v1039
      %v1250 = vpack.c.b16 %v1050, %v1045
      %v1251 = vpack.c.b16 %v1051, %v1046
      %v1252 = vpack.c.b16 %v1052, %v1047
      %v1253 = vpack.c.b16 %v1053, %v1048
      %v1254 = vpack.c.b16 %v1054, %v1049
      %v1255 = vpack.c.b16 %v1060, %v1055
      %v1256 = vpack.c.b16 %v1061, %v1056
      %v1257 = vpack.c.b16 %v1062, %v1057
      %v1258 = vpack.c.b16 %v1063, %v1058
      %v1259 = vpack.c.b16 %v1064, %v1059
      %v1260 = vpack.c.b16 %v1070, %v1065
      %v1261 = vpack.c.b16 %v1071, %v1066
      %v1262 = vpack.c.b16 %v1072, %v1067
      %v1263 = vpack.c.b16 %v1073, %v1068
      %v1264 = vpack.c.b16 %v1074, %v1069
      %v1265 = vpack.c.b16 %v1080, %v1075
      %v1266 = vpack.c.b16 %v1081, %v1076
      %v1267 = vpack.c.b16 %v1082, %v1077
      %v1268 = vpack.c.b16 %v1083, %v1078
      %v1269 = vpack.c.b16 %v1084, %v1079
      %v1270 = vpack.c.b16 %v1090, %v1085
      %v1271 = vpack.c.b16 %v1091, %v1086
      %v1272 = vpack.c.b16 %v1092, %v1087
      %v1273 = vpack.c.b16 %v1093, %v1088
      %v1274 = vpack.c.b16 %v1094, %v1089
      %v1275 = vpack.c.b16 %v1100, %v1095
      %v1276 = vpack.c.b16 %v1101, %v1096
      %v1277 = vpack.c.b16 %v1102, %v1097
      %v1278 = vpack.c.b16 %v1103, %v1098
      %v1279 = vpack.c.b16 %v1104, %v1099
      %v1280 = vpack.c.b16 %v1110, %v1105
      %v1281 = vpack.c.b16 %v1111, %v1106
      %v1282 = vpack.c.b16 %v1112, %v1107
      %v1283 = vpack.c.b16 %v1113, %v1108
      %v1284 = vpack.c.b16 %v1114, %v1109
      %v1285 = vpack.c.b16 %v1120, %v1115
      %v1286 = vpack.c.b16 %v1121, %v1116
      %v1287 = vpack.c.b16 %v1122, %v1117
      %v1288 = vpack.c.b16 %v1123, %v1118
      %v1289 = vpack.c.b16 %v1124, %v1119
      %v1290 = vpack.c.b16 %v1130, %v1125
      %v1291 = vpack.c.b16 %v1131, %v1126
      %v1292 = vpack.c.b16 %v1132, %v1127
      %v1293 = vpack.c.b16 %v1133, %v1128
      %v1294 = vpack.c.b16 %v1134, %v1129
      %1455 = vmatprep.subr.bf16.mxu0 %v1136
      %1456 = vmatpush1.bf16.msra.mxu0 %v1135
      %1457 = vmatprep.subr.bf16.mxu0 %v1141
      %1458 = vmatpush1.bf16.msra.mxu0 %v1140
      %1459 = vmatprep.subr.bf16.mxu0 %v1146
      %1460 = vmatpush1.bf16.msra.mxu0 %v1145
      %1461 = vmatprep.subr.bf16.mxu0 %v1151
      %1462 = vmatpush1.bf16.msra.mxu0 %v1150
      %1463 = vmatprep.subr.bf16.mxu0 %v1156
      %1464 = vmatpush1.bf16.msra.mxu0 %v1155
      %1465 = vmatprep.subr.bf16.mxu0 %v1161
      %1466 = vmatpush1.bf16.msra.mxu0 %v1160
      %1467 = vmatprep.subr.bf16.mxu0 %v1166
      %1468 = vmatpush1.bf16.msra.mxu0 %v1165
      %1469 = vmatprep.subr.bf16.mxu0 %v1171
      %1470 = vmatpush1.bf16.msra.mxu0 %v1170
      %1471 = vmatprep.subr.bf16.mxu0 %v1176
      %1472 = vmatpush1.bf16.msra.mxu0 %v1175
      %1473 = vmatprep.subr.bf16.mxu0 %v1181
      %1474 = vmatpush1.bf16.msra.mxu0 %v1180
      %1475 = vmatprep.subr.bf16.mxu0 %v1186
      %1476 = vmatpush1.bf16.msra.mxu0 %v1185
      %1477 = vmatprep.subr.bf16.mxu0 %v1191
      %1478 = vmatpush1.bf16.msra.mxu0 %v1190
      %1479 = vmatprep.subr.bf16.mxu0 %v1196
      %1480 = vmatpush1.bf16.msra.mxu0 %v1195
      %1481 = vmatprep.subr.bf16.mxu0 %v1201
      %1482 = vmatpush1.bf16.msra.mxu0 %v1200
      %1483 = vmatprep.subr.bf16.mxu0 %v1206
      %1484 = vmatpush1.bf16.msra.mxu0 %v1205
      %1485 = vmatprep.subr.bf16.mxu0 %v1211
      %1486 = vmatpush1.bf16.msra.mxu0 %v1210
      %1487 = vmatprep.mubr.bf16.mxu0 %v568
      %1488 = vmatmul.mubr.bf16.gmra.mrb[0].mxu0 %v567
      %v1489 = vpop.f32.mrb[0].mxu0
      %v1490 = vadd.f32 %v461, %v1489
      %v1491 = vpop.f32.mrb[0].mxu0
      %v1492 = vadd.f32 %v465, %v1491
      %v1493 = vpop.f32.mrb[0].mxu0
      %v1494 = vadd.f32 %v461, %v1493
      %v1495 = vpop.f32.mrb[0].mxu0
      %v1496 = vadd.f32 %v465, %v1495
      %1497 = vmatprep.mubr.bf16.mxu0 %v572
      %1498 = vmatmul.mubr.bf16.gmra.mrb[0].mxu0 %v571
      %v1499 = vpop.f32.mrb[0].mxu0
      %v1500 = vadd.f32 %v461, %v1499
      %v1501 = vpop.f32.mrb[0].mxu0
      %v1502 = vadd.f32 %v465, %v1501
      %v1503 = vpop.f32.mrb[0].mxu0
      %v1504 = vadd.f32 %v461, %v1503
      %v1505 = vpop.f32.mrb[0].mxu0
      %v1506 = vadd.f32 %v465, %v1505
      %1507 = vmatprep.mubr.bf16.mxu0 %v576
      %1508 = vmatmul.mubr.bf16.gmra.mrb[0].mxu0 %v575
      %v1509 = vpop.f32.mrb[0].mxu0
      %v1510 = vadd.f32 %v461, %v1509
      %v1511 = vpop.f32.mrb[0].mxu0
      %v1512 = vadd.f32 %v465, %v1511
      %v1513 = vpop.f32.mrb[0].mxu0
      %v1514 = vadd.f32 %v461, %v1513
      %v1515 = vpop.f32.mrb[0].mxu0
      %v1516 = vadd.f32 %v465, %v1515
      %1517 = vmatprep.mubr.bf16.mxu0 %v580
      %1518 = vmatmul.mubr.bf16.gmra.mrb[0].mxu0 %v579
      %v1519 = vpop.f32.mrb[0].mxu0
      %v1520 = vadd.f32 %v461, %v1519
      %v1521 = vpop.f32.mrb[0].mxu0
      %v1522 = vadd.f32 %v465, %v1521
      %v1523 = vpop.f32.mrb[0].mxu0
      %v1524 = vadd.f32 %v461, %v1523
      %v1525 = vpop.f32.mrb[0].mxu0
      %v1526 = vadd.f32 %v465, %v1525
      %1527 = vmatprep.mubr.bf16.mxu0 %v584
      %1528 = vmatmul.mubr.bf16.gmra.mrb[0].mxu0 %v583
      %v1529 = vpop.f32.mrb[0].mxu0
      %v1530 = vadd.f32 %v461, %v1529
      %v1531 = vpop.f32.mrb[0].mxu0
      %v1532 = vadd.f32 %v465, %v1531
      %v1533 = vpop.f32.mrb[0].mxu0
      %v1534 = vadd.f32 %v461, %v1533
      %v1535 = vpop.f32.mrb[0].mxu0
      %v1536 = vadd.f32 %v465, %v1535
      %1537 = vmatprep.mubr.bf16.mxu0 %v588
      %1538 = vmatmul.mubr.bf16.gmra.mrb[0].mxu0 %v587
      %v1539 = vpop.f32.mrb[0].mxu0
      %v1540 = vadd.f32 %v461, %v1539
      %v1541 = vpop.f32.mrb[0].mxu0
      %v1542 = vadd.f32 %v465, %v1541
      %v1543 = vpop.f32.mrb[0].mxu0
      %v1544 = vadd.f32 %v461, %v1543
      %v1545 = vpop.f32.mrb[0].mxu0
      %v1546 = vadd.f32 %v465, %v1545
      %1547 = vmatprep.mubr.bf16.mxu0 %v592
      %1548 = vmatmul.mubr.bf16.gmra.mrb[0].mxu0 %v591
      %v1549 = vpop.f32.mrb[0].mxu0
      %v1550 = vadd.f32 %v461, %v1549
      %v1551 = vpop.f32.mrb[0].mxu0
      %v1552 = vadd.f32 %v465, %v1551
      %v1553 = vpop.f32.mrb[0].mxu0
      %v1554 = vadd.f32 %v461, %v1553
      %v1555 = vpop.f32.mrb[0].mxu0
      %v1556 = vadd.f32 %v465, %v1555
      %1557 = vdwg.mxu0
      %1558 = vmatprep.subr.bf16.mxu0 %v1216
      %1559 = vmatpush1.bf16.msra.mxu0 %v1215
      %1560 = vmatprep.subr.bf16.mxu0 %v1221
      %1561 = vmatpush1.bf16.msra.mxu0 %v1220
      %1562 = vmatprep.subr.bf16.mxu0 %v1226
      %1563 = vmatpush1.bf16.msra.mxu0 %v1225
      %1564 = vmatprep.subr.bf16.mxu0 %v1231
      %1565 = vmatpush1.bf16.msra.mxu0 %v1230
      %1566 = vmatprep.subr.bf16.mxu0 %v1236
      %1567 = vmatpush1.bf16.msra.mxu0 %v1235
      %1568 = vmatprep.subr.bf16.mxu0 %v1241
      %1569 = vmatpush1.bf16.msra.mxu0 %v1240
      %1570 = vmatprep.subr.bf16.mxu0 %v1246
      %1571 = vmatpush1.bf16.msra.mxu0 %v1245
      %1572 = vmatprep.subr.bf16.mxu0 %v1251
      %1573 = vmatpush1.bf16.msra.mxu0 %v1250
      %1574 = vmatprep.subr.bf16.mxu0 %v1256
      %1575 = vmatpush1.bf16.msra.mxu0 %v1255
      %1576 = vmatprep.subr.bf16.mxu0 %v1261
      %1577 = vmatpush1.bf16.msra.mxu0 %v1260
      %1578 = vmatprep.subr.bf16.mxu0 %v1266
      %1579 = vmatpush1.bf16.msra.mxu0 %v1265
      %1580 = vmatprep.subr.bf16.mxu0 %v1271
      %1581 = vmatpush1.bf16.msra.mxu0 %v1270
      %1582 = vmatprep.subr.bf16.mxu0 %v1276
      %1583 = vmatpush1.bf16.msra.mxu0 %v1275
      %1584 = vmatprep.subr.bf16.mxu0 %v1281
      %1585 = vmatpush1.bf16.msra.mxu0 %v1280
      %1586 = vmatprep.subr.bf16.mxu0 %v1286
      %1587 = vmatpush1.bf16.msra.mxu0 %v1285
      %1588 = vmatprep.subr.bf16.mxu0 %v1291
      %1589 = vmatpush1.bf16.msra.mxu0 %v1290
      %1590 = vmatprep.mubr.bf16.mxu0 %v570
      %1591 = vmatmul.mubr.bf16.gmra.mrb[0].mxu0 %v569
      %v1592 = vpop.f32.mrb[0].mxu0
      %v1593 = vadd.f32 %v1490, %v1592
      %v1594 = vpop.f32.mrb[0].mxu0
      %v1595 = vadd.f32 %v1492, %v1594
      %v1596 = vpop.f32.mrb[0].mxu0
      %v1597 = vadd.f32 %v1494, %v1596
      %v1598 = vpop.f32.mrb[0].mxu0
      %v1599 = vadd.f32 %v1496, %v1598
      %1600 = vmatprep.mubr.bf16.mxu0 %v574
      %1601 = vmatmul.mubr.bf16.gmra.mrb[0].mxu0 %v573
      %v1602 = vpop.f32.mrb[0].mxu0
      %v1603 = vadd.f32 %v1500, %v1602
      %v1604 = vpop.f32.mrb[0].mxu0
      %v1605 = vadd.f32 %v1502, %v1604
      %v1606 = vpop.f32.mrb[0].mxu0
      %v1607 = vadd.f32 %v1504, %v1606
      %v1608 = vpop.f32.mrb[0].mxu0
      %v1609 = vadd.f32 %v1506, %v1608
      %1610 = vmatprep.mubr.bf16.mxu0 %v578
      %1611 = vmatmul.mubr.bf16.gmra.mrb[0].mxu0 %v577
      %v1612 = vpop.f32.mrb[0].mxu0
      %v1613 = vadd.f32 %v1510, %v1612
      %v1614 = vpop.f32.mrb[0].mxu0
      %v1615 = vadd.f32 %v1512, %v1614
      %v1616 = vpop.f32.mrb[0].mxu0
      %v1617 = vadd.f32 %v1514, %v1616
      %v1618 = vpop.f32.mrb[0].mxu0
      %v1619 = vadd.f32 %v1516, %v1618
      %1620 = vmatprep.mubr.bf16.mxu0 %v582
      %1621 = vmatmul.mubr.bf16.gmra.mrb[0].mxu0 %v581
      %v1622 = vpop.f32.mrb[0].mxu0
      %v1623 = vadd.f32 %v1520, %v1622
      %v1624 = vpop.f32.mrb[0].mxu0
      %v1625 = vadd.f32 %v1522, %v1624
      %v1626 = vpop.f32.mrb[0].mxu0
      %v1627 = vadd.f32 %v1524, %v1626
      %v1628 = vpop.f32.mrb[0].mxu0
      %v1629 = vadd.f32 %v1526, %v1628
      %1630 = vmatprep.mubr.bf16.mxu0 %v586
      %1631 = vmatmul.mubr.bf16.gmra.mrb[0].mxu0 %v585
      %v1632 = vpop.f32.mrb[0].mxu0
      %v1633 = vadd.f32 %v1530, %v1632
      %v1634 = vpop.f32.mrb[0].mxu0
      %v1635 = vadd.f32 %v1532, %v1634
      %v1636 = vpop.f32.mrb[0].mxu0
      %v1637 = vadd.f32 %v1534, %v1636
      %v1638 = vpop.f32.mrb[0].mxu0
      %v1639 = vadd.f32 %v1536, %v1638
      %1640 = vmatprep.mubr.bf16.mxu0 %v590
      %1641 = vmatmul.mubr.bf16.gmra.mrb[0].mxu0 %v589
      %v1642 = vpop.f32.mrb[0].mxu0
      %v1643 = vadd.f32 %v1540, %v1642
      %v1644 = vpop.f32.mrb[0].mxu0
      %v1645 = vadd.f32 %v1542, %v1644
      %v1646 = vpop.f32.mrb[0].mxu0
      %v1647 = vadd.f32 %v1544, %v1646
      %v1648 = vpop.f32.mrb[0].mxu0
      %v1649 = vadd.f32 %v1546, %v1648
      %1650 = vmatprep.mubr.bf16.mxu0 %v594
      %1651 = vmatmul.mubr.bf16.gmra.mrb[0].mxu0 %v593
      %v1652 = vpop.f32.mrb[0].mxu0
      %v1653 = vadd.f32 %v1550, %v1652
      %v1654 = vpop.f32.mrb[0].mxu0
      %v1655 = vadd.f32 %v1552, %v1654
      %v1656 = vpop.f32.mrb[0].mxu0
      %v1657 = vadd.f32 %v1554, %v1656
      %v1658 = vpop.f32.mrb[0].mxu0
      %v1659 = vadd.f32 %v1556, %v1658
      %1660 = vdwg.mxu0
      %1661 = vmatprep.subr.bf16.mxu0 %v1138
      %1662 = vmatpush1.bf16.msra.mxu0 %v1137
      %1663 = vmatprep.subr.bf16.mxu0 %v1143
      %1664 = vmatpush1.bf16.msra.mxu0 %v1142
      %1665 = vmatprep.subr.bf16.mxu0 %v1148
      %1666 = vmatpush1.bf16.msra.mxu0 %v1147
      %1667 = vmatprep.subr.bf16.mxu0 %v1153
      %1668 = vmatpush1.bf16.msra.mxu0 %v1152
      %1669 = vmatprep.subr.bf16.mxu0 %v1158
      %1670 = vmatpush1.bf16.msra.mxu0 %v1157
      %1671 = vmatprep.subr.bf16.mxu0 %v1163
      %1672 = vmatpush1.bf16.msra.mxu0 %v1162
      %1673 = vmatprep.subr.bf16.mxu0 %v1168
      %1674 = vmatpush1.bf16.msra.mxu0 %v1167
      %1675 = vmatprep.subr.bf16.mxu0 %v1173
      %1676 = vmatpush1.bf16.msra.mxu0 %v1172
      %1677 = vmatprep.subr.bf16.mxu0 %v1178
      %1678 = vmatpush1.bf16.msra.mxu0 %v1177
      %1679 = vmatprep.subr.bf16.mxu0 %v1183
      %1680 = vmatpush1.bf16.msra.mxu0 %v1182
      %1681 = vmatprep.subr.bf16.mxu0 %v1188
      %1682 = vmatpush1.bf16.msra.mxu0 %v1187
      %1683 = vmatprep.subr.bf16.mxu0 %v1193
      %1684 = vmatpush1.bf16.msra.mxu0 %v1192
      %1685 = vmatprep.subr.bf16.mxu0 %v1198
      %1686 = vmatpush1.bf16.msra.mxu0 %v1197
      %1687 = vmatprep.subr.bf16.mxu0 %v1203
      %1688 = vmatpush1.bf16.msra.mxu0 %v1202
      %1689 = vmatprep.subr.bf16.mxu0 %v1208
      %1690 = vmatpush1.bf16.msra.mxu0 %v1207
      %1691 = vmatprep.subr.bf16.mxu0 %v1213
      %1692 = vmatpush1.bf16.msra.mxu0 %v1212
      %1693 = vmatprep.mubr.bf16.mxu0 %v568
      %1694 = vmatmul.mubr.bf16.gmra.mrb[0].mxu0 %v567
      %v1695 = vpop.f32.mrb[0].mxu0
      %v1696 = vadd.f32 %v469, %v1695
      %v1697 = vpop.f32.mrb[0].mxu0
      %v1698 = vadd.f32 %v473, %v1697
      %v1699 = vpop.f32.mrb[0].mxu0
      %v1700 = vadd.f32 %v469, %v1699
      %v1701 = vpop.f32.mrb[0].mxu0
      %v1702 = vadd.f32 %v473, %v1701
      %1703 = vmatprep.mubr.bf16.mxu0 %v572
      %1704 = vmatmul.mubr.bf16.gmra.mrb[0].mxu0 %v571
      %v1705 = vpop.f32.mrb[0].mxu0
      %v1706 = vadd.f32 %v469, %v1705
      %v1707 = vpop.f32.mrb[0].mxu0
      %v1708 = vadd.f32 %v473, %v1707
      %v1709 = vpop.f32.mrb[0].mxu0
      %v1710 = vadd.f32 %v469, %v1709
      %v1711 = vpop.f32.mrb[0].mxu0
      %v1712 = vadd.f32 %v473, %v1711
      %1713 = vmatprep.mubr.bf16.mxu0 %v576
      %1714 = vmatmul.mubr.bf16.gmra.mrb[0].mxu0 %v575
      %v1715 = vpop.f32.mrb[0].mxu0
      %v1716 = vadd.f32 %v469, %v1715
      %v1717 = vpop.f32.mrb[0].mxu0
      %v1718 = vadd.f32 %v473, %v1717
      %v1719 = vpop.f32.mrb[0].mxu0
      %v1720 = vadd.f32 %v469, %v1719
      %v1721 = vpop.f32.mrb[0].mxu0
      %v1722 = vadd.f32 %v473, %v1721
      %1723 = vmatprep.mubr.bf16.mxu0 %v580
      %1724 = vmatmul.mubr.bf16.gmra.mrb[0].mxu0 %v579
      %v1725 = vpop.f32.mrb[0].mxu0
      %v1726 = vadd.f32 %v469, %v1725
      %v1727 = vpop.f32.mrb[0].mxu0
      %v1728 = vadd.f32 %v473, %v1727
      %v1729 = vpop.f32.mrb[0].mxu0
      %v1730 = vadd.f32 %v469, %v1729
      %v1731 = vpop.f32.mrb[0].mxu0
      %v1732 = vadd.f32 %v473, %v1731
      %1733 = vmatprep.mubr.bf16.mxu0 %v584
      %1734 = vmatmul.mubr.bf16.gmra.mrb[0].mxu0 %v583
      %v1735 = vpop.f32.mrb[0].mxu0
      %v1736 = vadd.f32 %v469, %v1735
      %v1737 = vpop.f32.mrb[0].mxu0
      %v1738 = vadd.f32 %v473, %v1737
      %v1739 = vpop.f32.mrb[0].mxu0
      %v1740 = vadd.f32 %v469, %v1739
      %v1741 = vpop.f32.mrb[0].mxu0
      %v1742 = vadd.f32 %v473, %v1741
      %1743 = vmatprep.mubr.bf16.mxu0 %v588
      %1744 = vmatmul.mubr.bf16.gmra.mrb[0].mxu0 %v587
      %v1745 = vpop.f32.mrb[0].mxu0
      %v1746 = vadd.f32 %v469, %v1745
      %v1747 = vpop.f32.mrb[0].mxu0
      %v1748 = vadd.f32 %v473, %v1747
      %v1749 = vpop.f32.mrb[0].mxu0
      %v1750 = vadd.f32 %v469, %v1749
      %v1751 = vpop.f32.mrb[0].mxu0
      %v1752 = vadd.f32 %v473, %v1751
      %1753 = vmatprep.mubr.bf16.mxu0 %v592
      %1754 = vmatmul.mubr.bf16.gmra.mrb[0].mxu0 %v591
      %v1755 = vpop.f32.mrb[0].mxu0
      %v1756 = vadd.f32 %v469, %v1755
      %v1757 = vpop.f32.mrb[0].mxu0
      %v1758 = vadd.f32 %v473, %v1757
      %v1759 = vpop.f32.mrb[0].mxu0
      %v1760 = vadd.f32 %v469, %v1759
      %v1761 = vpop.f32.mrb[0].mxu0
      %v1762 = vadd.f32 %v473, %v1761
      %1763 = vdwg.mxu0
      %1764 = vmatprep.subr.bf16.mxu0 %v1218
      %1765 = vmatpush1.bf16.msra.mxu0 %v1217
      %1766 = vmatprep.subr.bf16.mxu0 %v1223
      %1767 = vmatpush1.bf16.msra.mxu0 %v1222
      %1768 = vmatprep.subr.bf16.mxu0 %v1228
      %1769 = vmatpush1.bf16.msra.mxu0 %v1227
      %1770 = vmatprep.subr.bf16.mxu0 %v1233
      %1771 = vmatpush1.bf16.msra.mxu0 %v1232
      %1772 = vmatprep.subr.bf16.mxu0 %v1238
      %1773 = vmatpush1.bf16.msra.mxu0 %v1237
      %1774 = vmatprep.subr.bf16.mxu0 %v1243
      %1775 = vmatpush1.bf16.msra.mxu0 %v1242
      %1776 = vmatprep.subr.bf16.mxu0 %v1248
      %1777 = vmatpush1.bf16.msra.mxu0 %v1247
      %1778 = vmatprep.subr.bf16.mxu0 %v1253
      %1779 = vmatpush1.bf16.msra.mxu0 %v1252
      %1780 = vmatprep.subr.bf16.mxu0 %v1258
      %1781 = vmatpush1.bf16.msra.mxu0 %v1257
      %1782 = vmatprep.subr.bf16.mxu0 %v1263
      %1783 = vmatpush1.bf16.msra.mxu0 %v1262
      %1784 = vmatprep.subr.bf16.mxu0 %v1268
      %1785 = vmatpush1.bf16.msra.mxu0 %v1267
      %1786 = vmatprep.subr.bf16.mxu0 %v1273
      %1787 = vmatpush1.bf16.msra.mxu0 %v1272
      %1788 = vmatprep.subr.bf16.mxu0 %v1278
      %1789 = vmatpush1.bf16.msra.mxu0 %v1277
      %1790 = vmatprep.subr.bf16.mxu0 %v1283
      %1791 = vmatpush1.bf16.msra.mxu0 %v1282
      %1792 = vmatprep.subr.bf16.mxu0 %v1288
      %1793 = vmatpush1.bf16.msra.mxu0 %v1287
      %1794 = vmatprep.subr.bf16.mxu0 %v1293
      %1795 = vmatpush1.bf16.msra.mxu0 %v1292
      %1796 = vmatprep.mubr.bf16.mxu0 %v570
      %1797 = vmatmul.mubr.bf16.gmra.mrb[0].mxu0 %v569
      %v1798 = vpop.f32.mrb[0].mxu0
      %v1799 = vadd.f32 %v1696, %v1798
      %v1800 = vpop.f32.mrb[0].mxu0
      %v1801 = vadd.f32 %v1698, %v1800
      %v1802 = vpop.f32.mrb[0].mxu0
      %v1803 = vadd.f32 %v1700, %v1802
      %v1804 = vpop.f32.mrb[0].mxu0
      %v1805 = vadd.f32 %v1702, %v1804
      %1806 = vmatprep.mubr.bf16.mxu0 %v574
      %1807 = vmatmul.mubr.bf16.gmra.mrb[0].mxu0 %v573
      %v1808 = vpop.f32.mrb[0].mxu0
      %v1809 = vadd.f32 %v1706, %v1808
      %v1810 = vpop.f32.mrb[0].mxu0
      %v1811 = vadd.f32 %v1708, %v1810
      %v1812 = vpop.f32.mrb[0].mxu0
      %v1813 = vadd.f32 %v1710, %v1812
      %v1814 = vpop.f32.mrb[0].mxu0
      %v1815 = vadd.f32 %v1712, %v1814
      %1816 = vmatprep.mubr.bf16.mxu0 %v578
      %1817 = vmatmul.mubr.bf16.gmra.mrb[0].mxu0 %v577
      %v1818 = vpop.f32.mrb[0].mxu0
      %v1819 = vadd.f32 %v1716, %v1818
      %v1820 = vpop.f32.mrb[0].mxu0
      %v1821 = vadd.f32 %v1718, %v1820
      %v1822 = vpop.f32.mrb[0].mxu0
      %v1823 = vadd.f32 %v1720, %v1822
      %v1824 = vpop.f32.mrb[0].mxu0
      %v1825 = vadd.f32 %v1722, %v1824
      %1826 = vmatprep.mubr.bf16.mxu0 %v582
      %1827 = vmatmul.mubr.bf16.gmra.mrb[0].mxu0 %v581
      %v1828 = vpop.f32.mrb[0].mxu0
      %v1829 = vadd.f32 %v1726, %v1828
      %v1830 = vpop.f32.mrb[0].mxu0
      %v1831 = vadd.f32 %v1728, %v1830
      %v1832 = vpop.f32.mrb[0].mxu0
      %v1833 = vadd.f32 %v1730, %v1832
      %v1834 = vpop.f32.mrb[0].mxu0
      %v1835 = vadd.f32 %v1732, %v1834
      %1836 = vmatprep.mubr.bf16.mxu0 %v586
      %1837 = vmatmul.mubr.bf16.gmra.mrb[0].mxu0 %v585
      %v1838 = vpop.f32.mrb[0].mxu0
      %v1839 = vadd.f32 %v1736, %v1838
      %v1840 = vpop.f32.mrb[0].mxu0
      %v1841 = vadd.f32 %v1738, %v1840
      %v1842 = vpop.f32.mrb[0].mxu0
      %v1843 = vadd.f32 %v1740, %v1842
      %v1844 = vpop.f32.mrb[0].mxu0
      %v1845 = vadd.f32 %v1742, %v1844
      %1846 = vmatprep.mubr.bf16.mxu0 %v590
      %1847 = vmatmul.mubr.bf16.gmra.mrb[0].mxu0 %v589
      %v1848 = vpop.f32.mrb[0].mxu0
      %v1849 = vadd.f32 %v1746, %v1848
      %v1850 = vpop.f32.mrb[0].mxu0
      %v1851 = vadd.f32 %v1748, %v1850
      %v1852 = vpop.f32.mrb[0].mxu0
      %v1853 = vadd.f32 %v1750, %v1852
      %v1854 = vpop.f32.mrb[0].mxu0
      %v1855 = vadd.f32 %v1752, %v1854
      %1856 = vmatprep.mubr.bf16.mxu0 %v594
      %1857 = vmatmul.mubr.bf16.gmra.mrb[0].mxu0 %v593
      %v1858 = vpop.f32.mrb[0].mxu0
      %v1859 = vadd.f32 %v1756, %v1858
      %v1860 = vpop.f32.mrb[0].mxu0
      %v1861 = vadd.f32 %v1758, %v1860
      %v1862 = vpop.f32.mrb[0].mxu0
      %v1863 = vadd.f32 %v1760, %v1862
      %v1864 = vpop.f32.mrb[0].mxu0
      %v1865 = vadd.f32 %v1762, %v1864
      %1866 = vdwg.mxu0
      %1867 = vmatprep.subr.bf16.mxu0 0
      %1868 = vmatpush1.bf16.msra.mxu0 %v1139
      %1869 = vmatprep.subr.bf16.mxu0 0
      %1870 = vmatpush1.bf16.msra.mxu0 %v1144
      %1871 = vmatprep.subr.bf16.mxu0 0
      %1872 = vmatpush1.bf16.msra.mxu0 %v1149
      %1873 = vmatprep.subr.bf16.mxu0 0
      %1874 = vmatpush1.bf16.msra.mxu0 %v1154
      %1875 = vmatprep.subr.bf16.mxu0 0
      %1876 = vmatpush1.bf16.msra.mxu0 %v1159
      %1877 = vmatprep.subr.bf16.mxu0 0
      %1878 = vmatpush1.bf16.msra.mxu0 %v1164
      %1879 = vmatprep.subr.bf16.mxu0 0
      %1880 = vmatpush1.bf16.msra.mxu0 %v1169
      %1881 = vmatprep.subr.bf16.mxu0 0
      %1882 = vmatpush1.bf16.msra.mxu0 %v1174
      %1883 = vmatprep.subr.bf16.mxu0 0
      %1884 = vmatpush1.bf16.msra.mxu0 %v1179
      %1885 = vmatprep.subr.bf16.mxu0 0
      %1886 = vmatpush1.bf16.msra.mxu0 %v1184
      %1887 = vmatprep.subr.bf16.mxu0 0
      %1888 = vmatpush1.bf16.msra.mxu0 %v1189
      %1889 = vmatprep.subr.bf16.mxu0 0
      %1890 = vmatpush1.bf16.msra.mxu0 %v1194
      %1891 = vmatprep.subr.bf16.mxu0 0
      %1892 = vmatpush1.bf16.msra.mxu0 %v1199
      %1893 = vmatprep.subr.bf16.mxu0 0
      %1894 = vmatpush1.bf16.msra.mxu0 %v1204
      %1895 = vmatprep.subr.bf16.mxu0 0
      %1896 = vmatpush1.bf16.msra.mxu0 %v1209
      %1897 = vmatprep.subr.bf16.mxu0 0
      %1898 = vmatpush1.bf16.msra.mxu0 %v1214
      %1899 = vmatprep.mubr.bf16.mxu0 %v568
      %1900 = vmatmul.mubr.bf16.gmra.mrb[0].mxu0 %v567
      %v1901 = vpop.f32.mrb[0].mxu0
      %v1902 = vadd.f32 %v477, %v1901
      %v1903 = vpop.f32.mrb[0].mxu0
      %v1904 = vpop.f32.mrb[0].mxu0
      %v1905 = vadd.f32 %v477, %v1904
      %v1906 = vpop.f32.mrb[0].mxu0
      %1907 = vmatprep.mubr.bf16.mxu0 %v572
      %1908 = vmatmul.mubr.bf16.gmra.mrb[0].mxu0 %v571
      %v1909 = vpop.f32.mrb[0].mxu0
      %v1910 = vadd.f32 %v477, %v1909
      %v1911 = vpop.f32.mrb[0].mxu0
      %v1912 = vpop.f32.mrb[0].mxu0
      %v1913 = vadd.f32 %v477, %v1912
      %v1914 = vpop.f32.mrb[0].mxu0
      %1915 = vmatprep.mubr.bf16.mxu0 %v576
      %1916 = vmatmul.mubr.bf16.gmra.mrb[0].mxu0 %v575
      %v1917 = vpop.f32.mrb[0].mxu0
      %v1918 = vadd.f32 %v477, %v1917
      %v1919 = vpop.f32.mrb[0].mxu0
      %v1920 = vpop.f32.mrb[0].mxu0
      %v1921 = vadd.f32 %v477, %v1920
      %v1922 = vpop.f32.mrb[0].mxu0
      %1923 = vmatprep.mubr.bf16.mxu0 %v580
      %1924 = vmatmul.mubr.bf16.gmra.mrb[0].mxu0 %v579
      %v1925 = vpop.f32.mrb[0].mxu0
      %v1926 = vadd.f32 %v477, %v1925
      %v1927 = vpop.f32.mrb[0].mxu0
      %v1928 = vpop.f32.mrb[0].mxu0
      %v1929 = vadd.f32 %v477, %v1928
      %v1930 = vpop.f32.mrb[0].mxu0
      %1931 = vmatprep.mubr.bf16.mxu0 %v584
      %1932 = vmatmul.mubr.bf16.gmra.mrb[0].mxu0 %v583
      %v1933 = vpop.f32.mrb[0].mxu0
      %v1934 = vadd.f32 %v477, %v1933
      %v1935 = vpop.f32.mrb[0].mxu0
      %v1936 = vpop.f32.mrb[0].mxu0
      %v1937 = vadd.f32 %v477, %v1936
      %v1938 = vpop.f32.mrb[0].mxu0
      %1939 = vmatprep.mubr.bf16.mxu0 %v588
      %1940 = vmatmul.mubr.bf16.gmra.mrb[0].mxu0 %v587
      %v1941 = vpop.f32.mrb[0].mxu0
      %v1942 = vadd.f32 %v477, %v1941
      %v1943 = vpop.f32.mrb[0].mxu0
      %v1944 = vpop.f32.mrb[0].mxu0
      %v1945 = vadd.f32 %v477, %v1944
      %v1946 = vpop.f32.mrb[0].mxu0
      %1947 = vmatprep.mubr.bf16.mxu0 %v592
      %1948 = vmatmul.mubr.bf16.gmra.mrb[0].mxu0 %v591
      %v1949 = vpop.f32.mrb[0].mxu0
      %v1950 = vadd.f32 %v477, %v1949
      %v1951 = vpop.f32.mrb[0].mxu0
      %v1952 = vpop.f32.mrb[0].mxu0
      %v1953 = vadd.f32 %v477, %v1952
      %v1954 = vpop.f32.mrb[0].mxu0
      %1955 = vdwg.mxu0
      %1956 = vmatprep.subr.bf16.mxu0 0
      %1957 = vmatpush1.bf16.msra.mxu0 %v1219
      %1958 = vmatprep.subr.bf16.mxu0 0
      %1959 = vmatpush1.bf16.msra.mxu0 %v1224
      %1960 = vmatprep.subr.bf16.mxu0 0
      %1961 = vmatpush1.bf16.msra.mxu0 %v1229
      %1962 = vmatprep.subr.bf16.mxu0 0
      %1963 = vmatpush1.bf16.msra.mxu0 %v1234
      %1964 = vmatprep.subr.bf16.mxu0 0
      %1965 = vmatpush1.bf16.msra.mxu0 %v1239
      %1966 = vmatprep.subr.bf16.mxu0 0
      %1967 = vmatpush1.bf16.msra.mxu0 %v1244
      %1968 = vmatprep.subr.bf16.mxu0 0
      %1969 = vmatpush1.bf16.msra.mxu0 %v1249
      %1970 = vmatprep.subr.bf16.mxu0 0
      %1971 = vmatpush1.bf16.msra.mxu0 %v1254
      %1972 = vmatprep.subr.bf16.mxu0 0
      %1973 = vmatpush1.bf16.msra.mxu0 %v1259
      %1974 = vmatprep.subr.bf16.mxu0 0
      %1975 = vmatpush1.bf16.msra.mxu0 %v1264
      %1976 = vmatprep.subr.bf16.mxu0 0
      %1977 = vmatpush1.bf16.msra.mxu0 %v1269
      %1978 = vmatprep.subr.bf16.mxu0 0
      %1979 = vmatpush1.bf16.msra.mxu0 %v1274
      %1980 = vmatprep.subr.bf16.mxu0 0
      %1981 = vmatpush1.bf16.msra.mxu0 %v1279
      %1982 = vmatprep.subr.bf16.mxu0 0
      %1983 = vmatpush1.bf16.msra.mxu0 %v1284
      %1984 = vmatprep.subr.bf16.mxu0 0
      %1985 = vmatpush1.bf16.msra.mxu0 %v1289
      %1986 = vmatprep.subr.bf16.mxu0 0
      %1987 = vmatpush1.bf16.msra.mxu0 %v1294
      %1988 = vmatprep.mubr.bf16.mxu0 %v570
      %1989 = vmatmul.mubr.bf16.gmra.mrb[0].mxu0 %v569
      %v1990 = vpop.f32.mrb[0].mxu0
      %v1991 = vadd.f32 %v1902, %v1990
      %v1992 = vpop.f32.mrb[0].mxu0
      %v1993 = vpop.f32.mrb[0].mxu0
      %v1994 = vadd.f32 %v1905, %v1993
      %v1995 = vpop.f32.mrb[0].mxu0
      %1996 = vmatprep.mubr.bf16.mxu0 %v574
      %1997 = vmatmul.mubr.bf16.gmra.mrb[0].mxu0 %v573
      %v1998 = vpop.f32.mrb[0].mxu0
      %v1999 = vadd.f32 %v1910, %v1998
      %v2000 = vpop.f32.mrb[0].mxu0
      %v2001 = vpop.f32.mrb[0].mxu0
      %v2002 = vadd.f32 %v1913, %v2001
      %v2003 = vpop.f32.mrb[0].mxu0
      %2004 = vmatprep.mubr.bf16.mxu0 %v578
      %2005 = vmatmul.mubr.bf16.gmra.mrb[0].mxu0 %v577
      %v2006 = vpop.f32.mrb[0].mxu0
      %v2007 = vadd.f32 %v1918, %v2006
      %v2008 = vpop.f32.mrb[0].mxu0
      %v2009 = vpop.f32.mrb[0].mxu0
      %v2010 = vadd.f32 %v1921, %v2009
      %v2011 = vpop.f32.mrb[0].mxu0
      %2012 = vmatprep.mubr.bf16.mxu0 %v582
      %2013 = vmatmul.mubr.bf16.gmra.mrb[0].mxu0 %v581
      %v2014 = vpop.f32.mrb[0].mxu0
      %v2015 = vadd.f32 %v1926, %v2014
      %v2016 = vpop.f32.mrb[0].mxu0
      %v2017 = vpop.f32.mrb[0].mxu0
      %v2018 = vadd.f32 %v1929, %v2017
      %v2019 = vpop.f32.mrb[0].mxu0
      %2020 = vmatprep.mubr.bf16.mxu0 %v586
      %2021 = vmatmul.mubr.bf16.gmra.mrb[0].mxu0 %v585
      %v2022 = vpop.f32.mrb[0].mxu0
      %v2023 = vadd.f32 %v1934, %v2022
      %v2024 = vpop.f32.mrb[0].mxu0
      %v2025 = vpop.f32.mrb[0].mxu0
      %v2026 = vadd.f32 %v1937, %v2025
      %v2027 = vpop.f32.mrb[0].mxu0
      %2028 = vmatprep.mubr.bf16.mxu0 %v590
      %2029 = vmatmul.mubr.bf16.gmra.mrb[0].mxu0 %v589
      %v2030 = vpop.f32.mrb[0].mxu0
      %v2031 = vadd.f32 %v1942, %v2030
      %v2032 = vpop.f32.mrb[0].mxu0
      %v2033 = vpop.f32.mrb[0].mxu0
      %v2034 = vadd.f32 %v1945, %v2033
      %v2035 = vpop.f32.mrb[0].mxu0
      %2036 = vmatprep.mubr.bf16.mxu0 %v594
      %2037 = vmatmul.mubr.bf16.gmra.mrb[0].mxu0 %v593
      %v2038 = vpop.f32.mrb[0].mxu0
      %v2039 = vadd.f32 %v1950, %v2038
      %v2040 = vpop.f32.mrb[0].mxu0
      %v2041 = vpop.f32.mrb[0].mxu0
      %v2042 = vadd.f32 %v1953, %v2041
      %v2043 = vpop.f32.mrb[0].mxu0
      %2044 = vdwg.mxu0
      %vm2045 = vcmp.gt.f32.partialorder %v1593, 7.0
      %vm2046 = vcmp.gt.f32.partialorder %v1595, 7.0
      %vm2047 = vcmp.gt.f32.partialorder %v1799, 7.0
      %vm2048 = vcmp.gt.f32.partialorder %v1801, 7.0
      %vm2049 = vcmp.gt.f32.partialorder %v1991, 7.0
      %vm2050 = vcmp.gt.f32.partialorder %v1597, 7.0
      %vm2051 = vcmp.gt.f32.partialorder %v1599, 7.0
      %vm2052 = vcmp.gt.f32.partialorder %v1803, 7.0
      %vm2053 = vcmp.gt.f32.partialorder %v1805, 7.0
      %vm2054 = vcmp.gt.f32.partialorder %v1994, 7.0
      %vm2055 = vcmp.gt.f32.partialorder %v1603, 7.0
      %vm2056 = vcmp.gt.f32.partialorder %v1605, 7.0
      %vm2057 = vcmp.gt.f32.partialorder %v1809, 7.0
      %vm2058 = vcmp.gt.f32.partialorder %v1811, 7.0
      %vm2059 = vcmp.gt.f32.partialorder %v1999, 7.0
      %vm2060 = vcmp.gt.f32.partialorder %v1607, 7.0
      %vm2061 = vcmp.gt.f32.partialorder %v1609, 7.0
      %vm2062 = vcmp.gt.f32.partialorder %v1813, 7.0
      %vm2063 = vcmp.gt.f32.partialorder %v1815, 7.0
      %vm2064 = vcmp.gt.f32.partialorder %v2002, 7.0
      %vm2065 = vcmp.gt.f32.partialorder %v1613, 7.0
      %vm2066 = vcmp.gt.f32.partialorder %v1615, 7.0
      %vm2067 = vcmp.gt.f32.partialorder %v1819, 7.0
      %vm2068 = vcmp.gt.f32.partialorder %v1821, 7.0
      %vm2069 = vcmp.gt.f32.partialorder %v2007, 7.0
      %vm2070 = vcmp.gt.f32.partialorder %v1617, 7.0
      %vm2071 = vcmp.gt.f32.partialorder %v1619, 7.0
      %vm2072 = vcmp.gt.f32.partialorder %v1823, 7.0
      %vm2073 = vcmp.gt.f32.partialorder %v1825, 7.0
      %vm2074 = vcmp.gt.f32.partialorder %v2010, 7.0
      %vm2075 = vcmp.gt.f32.partialorder %v1623, 7.0
      %vm2076 = vcmp.gt.f32.partialorder %v1625, 7.0
      %vm2077 = vcmp.gt.f32.partialorder %v1829, 7.0
      %vm2078 = vcmp.gt.f32.partialorder %v1831, 7.0
      %vm2079 = vcmp.gt.f32.partialorder %v2015, 7.0
      %vm2080 = vcmp.gt.f32.partialorder %v1627, 7.0
      %vm2081 = vcmp.gt.f32.partialorder %v1629, 7.0
      %vm2082 = vcmp.gt.f32.partialorder %v1833, 7.0
      %vm2083 = vcmp.gt.f32.partialorder %v1835, 7.0
      %vm2084 = vcmp.gt.f32.partialorder %v2018, 7.0
      %vm2085 = vcmp.gt.f32.partialorder %v1633, 7.0
      %vm2086 = vcmp.gt.f32.partialorder %v1635, 7.0
      %vm2087 = vcmp.gt.f32.partialorder %v1839, 7.0
      %vm2088 = vcmp.gt.f32.partialorder %v1841, 7.0
      %vm2089 = vcmp.gt.f32.partialorder %v2023, 7.0
      %vm2090 = vcmp.gt.f32.partialorder %v1637, 7.0
      %vm2091 = vcmp.gt.f32.partialorder %v1639, 7.0
      %vm2092 = vcmp.gt.f32.partialorder %v1843, 7.0
      %vm2093 = vcmp.gt.f32.partialorder %v1845, 7.0
      %vm2094 = vcmp.gt.f32.partialorder %v2026, 7.0
      %vm2095 = vcmp.gt.f32.partialorder %v1643, 7.0
      %vm2096 = vcmp.gt.f32.partialorder %v1645, 7.0
      %vm2097 = vcmp.gt.f32.partialorder %v1849, 7.0
      %vm2098 = vcmp.gt.f32.partialorder %v1851, 7.0
      %vm2099 = vcmp.gt.f32.partialorder %v2031, 7.0
      %vm2100 = vcmp.gt.f32.partialorder %v1647, 7.0
      %vm2101 = vcmp.gt.f32.partialorder %v1649, 7.0
      %vm2102 = vcmp.gt.f32.partialorder %v1853, 7.0
      %vm2103 = vcmp.gt.f32.partialorder %v1855, 7.0
      %vm2104 = vcmp.gt.f32.partialorder %v2034, 7.0
      %vm2105 = vcmp.gt.f32.partialorder %v1653, 7.0
      %vm2106 = vcmp.gt.f32.partialorder %v1655, 7.0
      %vm2107 = vcmp.gt.f32.partialorder %v1859, 7.0
      %vm2108 = vcmp.gt.f32.partialorder %v1861, 7.0
      %vm2109 = vcmp.gt.f32.partialorder %v2039, 7.0
      %vm2110 = vcmp.gt.f32.partialorder %v1657, 7.0
      %vm2111 = vcmp.gt.f32.partialorder %v1659, 7.0
      %vm2112 = vcmp.gt.f32.partialorder %v1863, 7.0
      %vm2113 = vcmp.gt.f32.partialorder %v1865, 7.0
      %vm2114 = vcmp.gt.f32.partialorder %v2042, 7.0
      %v2115 = vmul.f32 %v1593, 0.91
      %v2116 = vmul.f32 %v1595, 0.91
      %v2117 = vmul.f32 %v1799, 0.91
      %v2118 = vmul.f32 %v1801, 0.91
      %v2119 = vmul.f32 %v1991, 0.91
      %v2120 = vmul.f32 %v1597, 0.91
      %v2121 = vmul.f32 %v1599, 0.91
      %v2122 = vmul.f32 %v1803, 0.91
      %v2123 = vmul.f32 %v1805, 0.91
      %v2124 = vmul.f32 %v1994, 0.91
      %v2125 = vmul.f32 %v1603, 0.91
      %v2126 = vmul.f32 %v1605, 0.91
      %v2127 = vmul.f32 %v1809, 0.91
      %v2128 = vmul.f32 %v1811, 0.91
      %v2129 = vmul.f32 %v1999, 0.91
      %v2130 = vmul.f32 %v1607, 0.91
      %v2131 = vmul.f32 %v1609, 0.91
      %v2132 = vmul.f32 %v1813, 0.91
      %v2133 = vmul.f32 %v1815, 0.91
      %v2134 = vmul.f32 %v2002, 0.91
      %v2135 = vmul.f32 %v1613, 0.91
      %v2136 = vmul.f32 %v1615, 0.91
      %v2137 = vmul.f32 %v1819, 0.91
      %v2138 = vmul.f32 %v1821, 0.91
      %v2139 = vmul.f32 %v2007, 0.91
      %v2140 = vmul.f32 %v1617, 0.91
      %v2141 = vmul.f32 %v1619, 0.91
      %v2142 = vmul.f32 %v1823, 0.91
      %v2143 = vmul.f32 %v1825, 0.91
      %v2144 = vmul.f32 %v2010, 0.91
      %v2145 = vmul.f32 %v1623, 0.91
      %v2146 = vmul.f32 %v1625, 0.91
      %v2147 = vmul.f32 %v1829, 0.91
      %v2148 = vmul.f32 %v1831, 0.91
      %v2149 = vmul.f32 %v2015, 0.91
      %v2150 = vmul.f32 %v1627, 0.91
      %v2151 = vmul.f32 %v1629, 0.91
      %v2152 = vmul.f32 %v1833, 0.91
      %v2153 = vmul.f32 %v1835, 0.91
      %v2154 = vmul.f32 %v2018, 0.91
      %v2155 = vmul.f32 %v1633, 0.91
      %v2156 = vmul.f32 %v1635, 0.91
      %v2157 = vmul.f32 %v1839, 0.91
      %v2158 = vmul.f32 %v1841, 0.91
      %v2159 = vmul.f32 %v2023, 0.91
      %v2160 = vmul.f32 %v1637, 0.91
      %v2161 = vmul.f32 %v1639, 0.91
      %v2162 = vmul.f32 %v1843, 0.91
      %v2163 = vmul.f32 %v1845, 0.91
      %v2164 = vmul.f32 %v2026, 0.91
      %v2165 = vmul.f32 %v1643, 0.91
      %v2166 = vmul.f32 %v1645, 0.91
      %v2167 = vmul.f32 %v1849, 0.91
      %v2168 = vmul.f32 %v1851, 0.91
      %v2169 = vmul.f32 %v2031, 0.91
      %v2170 = vmul.f32 %v1647, 0.91
      %v2171 = vmul.f32 %v1649, 0.91
      %v2172 = vmul.f32 %v1853, 0.91
      %v2173 = vmul.f32 %v1855, 0.91
      %v2174 = vmul.f32 %v2034, 0.91
      %v2175 = vmul.f32 %v1653, 0.91
      %v2176 = vmul.f32 %v1655, 0.91
      %v2177 = vmul.f32 %v1859, 0.91
      %v2178 = vmul.f32 %v1861, 0.91
      %v2179 = vmul.f32 %v2039, 0.91
      %v2180 = vmul.f32 %v1657, 0.91
      %v2181 = vmul.f32 %v1659, 0.91
      %v2182 = vmul.f32 %v1863, 0.91
      %v2183 = vmul.f32 %v1865, 0.91
      %v2184 = vmul.f32 %v2042, 0.91
      %v2185 = vsel %vm2045, %v1593, %v2115
      %v2186 = vsel %vm2046, %v1595, %v2116
      %v2187 = vsel %vm2047, %v1799, %v2117
      %v2188 = vsel %vm2048, %v1801, %v2118
      %v2189 = vsel %vm2049, %v1991, %v2119
      %v2190 = vsel %vm2050, %v1597, %v2120
      %v2191 = vsel %vm2051, %v1599, %v2121
      %v2192 = vsel %vm2052, %v1803, %v2122
      %v2193 = vsel %vm2053, %v1805, %v2123
      %v2194 = vsel %vm2054, %v1994, %v2124
      %v2195 = vsel %vm2055, %v1603, %v2125
      %v2196 = vsel %vm2056, %v1605, %v2126
      %v2197 = vsel %vm2057, %v1809, %v2127
      %v2198 = vsel %vm2058, %v1811, %v2128
      %v2199 = vsel %vm2059, %v1999, %v2129
      %v2200 = vsel %vm2060, %v1607, %v2130
      %v2201 = vsel %vm2061, %v1609, %v2131
      %v2202 = vsel %vm2062, %v1813, %v2132
      %v2203 = vsel %vm2063, %v1815, %v2133
      %v2204 = vsel %vm2064, %v2002, %v2134
      %v2205 = vsel %vm2065, %v1613, %v2135
      %v2206 = vsel %vm2066, %v1615, %v2136
      %v2207 = vsel %vm2067, %v1819, %v2137
      %v2208 = vsel %vm2068, %v1821, %v2138
      %v2209 = vsel %vm2069, %v2007, %v2139
      %v2210 = vsel %vm2070, %v1617, %v2140
      %v2211 = vsel %vm2071, %v1619, %v2141
      %v2212 = vsel %vm2072, %v1823, %v2142
      %v2213 = vsel %vm2073, %v1825, %v2143
      %v2214 = vsel %vm2074, %v2010, %v2144
      %v2215 = vsel %vm2075, %v1623, %v2145
      %v2216 = vsel %vm2076, %v1625, %v2146
      %v2217 = vsel %vm2077, %v1829, %v2147
      %v2218 = vsel %vm2078, %v1831, %v2148
      %v2219 = vsel %vm2079, %v2015, %v2149
      %v2220 = vsel %vm2080, %v1627, %v2150
      %v2221 = vsel %vm2081, %v1629, %v2151
      %v2222 = vsel %vm2082, %v1833, %v2152
      %v2223 = vsel %vm2083, %v1835, %v2153
      %v2224 = vsel %vm2084, %v2018, %v2154
      %v2225 = vsel %vm2085, %v1633, %v2155
      %v2226 = vsel %vm2086, %v1635, %v2156
      %v2227 = vsel %vm2087, %v1839, %v2157
      %v2228 = vsel %vm2088, %v1841, %v2158
      %v2229 = vsel %vm2089, %v2023, %v2159
      %v2230 = vsel %vm2090, %v1637, %v2160
      %v2231 = vsel %vm2091, %v1639, %v2161
      %v2232 = vsel %vm2092, %v1843, %v2162
      %v2233 = vsel %vm2093, %v1845, %v2163
      %v2234 = vsel %vm2094, %v2026, %v2164
      %v2235 = vsel %vm2095, %v1643, %v2165
      %v2236 = vsel %vm2096, %v1645, %v2166
      %v2237 = vsel %vm2097, %v1849, %v2167
      %v2238 = vsel %vm2098, %v1851, %v2168
      %v2239 = vsel %vm2099, %v2031, %v2169
      %v2240 = vsel %vm2100, %v1647, %v2170
      %v2241 = vsel %vm2101, %v1649, %v2171
      %v2242 = vsel %vm2102, %v1853, %v2172
      %v2243 = vsel %vm2103, %v1855, %v2173
      %v2244 = vsel %vm2104, %v2034, %v2174
      %v2245 = vsel %vm2105, %v1653, %v2175
      %v2246 = vsel %vm2106, %v1655, %v2176
      %v2247 = vsel %vm2107, %v1859, %v2177
      %v2248 = vsel %vm2108, %v1861, %v2178
      %v2249 = vsel %vm2109, %v2039, %v2179
      %v2250 = vsel %vm2110, %v1657, %v2180
      %v2251 = vsel %vm2111, %v1659, %v2181
      %v2252 = vsel %vm2112, %v1863, %v2182
      %v2253 = vsel %vm2113, %v1865, %v2183
      %v2254 = vsel %vm2114, %v2042, %v2184
      %2255 = vst [vmem:[%s233] sm:$0xff] %v2185
      %2256 = vst [vmem:[%s233 + $0x8] sm:$0xff] %v2186
      %2257 = vst [vmem:[%s233 + $0x10] sm:$0xff] %v2187
      %2258 = vst [vmem:[%s233 + $0x18] sm:$0xff] %v2188
      %2259 = vst [vmem:[%s233 + $0x20] sm:$0xff] %v2189
      %2260 = vst [vmem:[%s233 + $0x28] sm:$0xff] %v2190
      %2261 = vst [vmem:[%s233 + $0x30] sm:$0xff] %v2191
      %2262 = vst [vmem:[%s233 + $0x38] sm:$0xff] %v2192
      %2263 = vst [vmem:[%s233 + $0x40] sm:$0xff] %v2193
      %2264 = vst [vmem:[%s233 + $0x48] sm:$0xff] %v2194
      %2265 = vst [vmem:[%s233 + $0x50] sm:$0xff] %v2195
      %2266 = vst [vmem:[%s233 + $0x58] sm:$0xff] %v2196
      %2267 = vst [vmem:[%s233 + $0x60] sm:$0xff] %v2197
      %2268 = vst [vmem:[%s233 + $0x68] sm:$0xff] %v2198
      %2269 = vst [vmem:[%s233 + $0x70] sm:$0xff] %v2199
      %2270 = vst [vmem:[%s233 + $0x78] sm:$0xff] %v2200
      %2271 = vst [vmem:[%s233 + $0x80] sm:$0xff] %v2201
      %2272 = vst [vmem:[%s233 + $0x88] sm:$0xff] %v2202
      %2273 = vst [vmem:[%s233 + $0x90] sm:$0xff] %v2203
      %2274 = vst [vmem:[%s233 + $0x98] sm:$0xff] %v2204
      %2275 = vst [vmem:[%s233 + $0xa0] sm:$0xff] %v2205
      %2276 = vst [vmem:[%s233 + $0xa8] sm:$0xff] %v2206
      %2277 = vst [vmem:[%s233 + $0xb0] sm:$0xff] %v2207
      %2278 = vst [vmem:[%s233 + $0xb8] sm:$0xff] %v2208
      %2279 = vst [vmem:[%s233 + $0xc0] sm:$0xff] %v2209
      %2280 = vst [vmem:[%s233 + $0xc8] sm:$0xff] %v2210
      %2281 = vst [vmem:[%s233 + $0xd0] sm:$0xff] %v2211
      %2282 = vst [vmem:[%s233 + $0xd8] sm:$0xff] %v2212
      %2283 = vst [vmem:[%s233 + $0xe0] sm:$0xff] %v2213
      %2284 = vst [vmem:[%s233 + $0xe8] sm:$0xff] %v2214
      %2285 = vst [vmem:[%s233 + $0xf0] sm:$0xff] %v2215
      %2286 = vst [vmem:[%s233 + $0xf8] sm:$0xff] %v2216
      %2287 = vst [vmem:[%s233 + $0x100] sm:$0xff] %v2217
      %2288 = vst [vmem:[%s233 + $0x108] sm:$0xff] %v2218
      %2289 = vst [vmem:[%s233 + $0x110] sm:$0xff] %v2219
      %2290 = vst [vmem:[%s233 + $0x118] sm:$0xff] %v2220
      %2291 = vst [vmem:[%s233 + $0x120] sm:$0xff] %v2221
      %2292 = vst [vmem:[%s233 + $0x128] sm:$0xff] %v2222
      %2293 = vst [vmem:[%s233 + $0x130] sm:$0xff] %v2223
      %2294 = vst [vmem:[%s233 + $0x138] sm:$0xff] %v2224
      %2295 = vst [vmem:[%s233 + $0x140] sm:$0xff] %v2225
      %2296 = vst [vmem:[%s233 + $0x148] sm:$0xff] %v2226
      %2297 = vst [vmem:[%s233 + $0x150] sm:$0xff] %v2227
      %2298 = vst [vmem:[%s233 + $0x158] sm:$0xff] %v2228
      %2299 = vst [vmem:[%s233 + $0x160] sm:$0xff] %v2229
      %2300 = vst [vmem:[%s233 + $0x168] sm:$0xff] %v2230
      %2301 = vst [vmem:[%s233 + $0x170] sm:$0xff] %v2231
      %2302 = vst [vmem:[%s233 + $0x178] sm:$0xff] %v2232
      %2303 = vst [vmem:[%s233 + $0x180] sm:$0xff] %v2233
      %2304 = vst [vmem:[%s233 + $0x188] sm:$0xff] %v2234
      %2305 = vst [vmem:[%s233 + $0x190] sm:$0xff] %v2235
      %2306 = vst [vmem:[%s233 + $0x198] sm:$0xff] %v2236
      %2307 = vst [vmem:[%s233 + $0x1a0] sm:$0xff] %v2237
      %2308 = vst [vmem:[%s233 + $0x1a8] sm:$0xff] %v2238
      %2309 = vst [vmem:[%s233 + $0x1b0] sm:$0xff] %v2239
      %2310 = vst [vmem:[%s233 + $0x1b8] sm:$0xff] %v2240
      %2311 = vst [vmem:[%s233 + $0x1c0] sm:$0xff] %v2241
      %2312 = vst [vmem:[%s233 + $0x1c8] sm:$0xff] %v2242
      %2313 = vst [vmem:[%s233 + $0x1d0] sm:$0xff] %v2243
      %2314 = vst [vmem:[%s233 + $0x1d8] sm:$0xff] %v2244
      %2315 = vst [vmem:[%s233 + $0x1e0] sm:$0xff] %v2245
      %2316 = vst [vmem:[%s233 + $0x1e8] sm:$0xff] %v2246
      %2317 = vst [vmem:[%s233 + $0x1f0] sm:$0xff] %v2247
      %2318 = vst [vmem:[%s233 + $0x1f8] sm:$0xff] %v2248
      %2319 = vst [vmem:[%s233 + $0x200] sm:$0xff] %v2249
      %2320 = vst [vmem:[%s233 + $0x208] sm:$0xff] %v2250
      %2321 = vst [vmem:[%s233 + $0x210] sm:$0xff] %v2251
      %2322 = vst [vmem:[%s233 + $0x218] sm:$0xff] %v2252
      %2323 = vst [vmem:[%s233 + $0x220] sm:$0xff] %v2253
      %2324 = vst [vmem:[%s233 + $0x228] sm:$0xff] %v2254
      %s2325 = smul.u32 14, %s19
      %p2326 = scmp.lt.s32.totalorder %s18, 8
      %s2327 = scalar_select %p2326, %s18, 8
      %p2328 = scmp.lt.s32.totalorder %s2325, 13
      %s2329 = scalar_select %p2328, %s2325, 13
      %s2330 = smul.addr %s2329, 5
      %s2331 = smul.addr %s2327, 70
      %s2332 = sadd.s32 %s2330, %s2331
      %s2333 = smul.addr %s2332, 8
      %s2334 = scalar_lea.vmem %s3, %s2333
      // Predicated region
      $region33: #{conv_transpose_where.1} parent=31 // pred_check
        %p2335 = pneg %p121
      $region34: #{conv_transpose_where.1} parent=31 // pred_check_branch
        %2337 = sbr.rel (%p2335) target = $region36
      $region35: #{conv_transpose_where.1} parent=31 // pred_region
        %s2338 = smul.u32 14, %s19
      $region36: #{conv_transpose_where.1} parent=31 // pred_fallthru
        _
    $region32: #{conv_transpose_where.1} parent=5 // pred_fallthru
      _
    %p2339 = scmp.le.s32.totalorder 2, %s9
    // Predicated region
    $region37: #{conv_transpose_where.1} parent=5 // pred_check
      %p2340 = pneg %p2339
    $region38: #{conv_transpose_where.1} parent=5 // pred_check_branch
      %2342 = sbr.rel (%p2340) target = $region40
    $region39: #{conv_transpose_where.1} parent=5 // pred_region
      %s2343 = ssub.s32 %s9, 2
      // Predicated region
      $region41: #{conv_transpose_where.1} parent=39 // pred_check
        %p2344 = pneg %p127
      $region42: #{conv_transpose_where.1} parent=39 // pred_check_branch
        %2346 = sbr.rel (%p2344) target = $region44
      $region43: #{conv_transpose_where.1} parent=39 // pred_region
        %s2347 = smul.u32 14, %s21
        %p2348 = scmp.lt.s32.totalorder %s20, 8
        %s2349 = scalar_select %p2348, %s20, 8
        %p2350 = scmp.lt.s32.totalorder %s2347, 13
        %s2351 = scalar_select %p2350, %s2347, 13
        %s2352 = smul.addr %s2351, 5
        %s2353 = smul.addr %s2349, 70
        %s2354 = sadd.s32 %s2352, %s2353
        %s2355 = smul.addr %s2354, 8
        %s2356 = scalar_lea.vmem %s3, %s2355
      $region44: #{conv_transpose_where.1} parent=39 // pred_fallthru
        _
    $region40: #{conv_transpose_where.1} parent=5 // pred_fallthru
      _
  $region6: #{conv_transpose_where.1} parent=0 // loop_footer
    %s13 = sadd.s32 1, %s9
  $region7: #{conv_transpose_where.1} parent=0 // loop_footer_branch
    %8 = sbr.rel target = $region3
  $region8: #{conv_transpose_where.1} parent=0 // loop_exit
    _

</llo_original>
